<compile_context>
chip_gen: v7x
topology: tpu7x:2x2x1
jax: 0.10.0
libtpu: 0.0.40
codegen_flags: <defaults>
</compile_context>

<pallas_src>
import jax
import jax.numpy as jnp
from jax.experimental import pallas as pl
from jax.experimental.pallas import tpu as pltpu

# ----------------------------- configuration --------------------------------
N_NODES  = 8      # number of graph nodes ("batch" rows)
FEAT_DIM = 32     # feature_dim
NB_ZERO  = 1      # Cell_Zero always builds exactly one MixedOp
NB_FIRST = 2
NB_LAST  = 1
K_OPS    = 3      # candidate operations per MixedOp (synthetic)
BN_EPS   = 1e-5

N_FIRST_OPS = sum(i + 1 for i in range(NB_FIRST))            # 3
N_LAST_OPS  = sum(i + NB_FIRST for i in range(NB_LAST))      # 2
N_BRANCHES  = NB_ZERO + N_FIRST_OPS + NB_FIRST + N_LAST_OPS  # 8 MixedOps total
N_CAT       = NB_FIRST + NB_LAST                             # 3 states concatenated


# ------------------------------ Pallas kernel --------------------------------
def cell_kernel(x_ref, wA_ref, bA_ref, wB_ref, bB_ref, wcat_ref, bcat_ref, o_ref):
    """Fused Cell forward (single invocation, everything resident in VMEM).

    x_ref    : (N, D)   f32  input node features (src_emb)
    wA_ref   : (2, D, K*D)        bf16  single-branch weights (BN + arch folded),
                                        K candidates concatenated on the output axis
    bA_ref   : (2, 1, K*D)        f32   matching biases
    wB_ref   : (3, 2D, K*2D)      bf16  merged branch-pair weights, block-diagonal with
                                        interleaved candidate layout
    bB_ref   : (3, 1, K*2D)       f32   matching biases
    wcat_ref : (N_CAT*D, D)       bf16  concat Linear (BN folded)
    bcat_ref : (1, D)             f32   concat Linear bias (BN folded)
    o_ref    : (N, D)             f32   output
    """
    D = FEAT_DIM

    def relu_ksum(z, width):
        # ReLU then sum the K candidate chunks (each `width` lanes wide).
        z = jnp.maximum(z, 0.0)
        return z[:, 0:width] + z[:, width:2 * width] + z[:, 2 * width:3 * width]

    def single(idx, h):
        # One MixedOp: all K candidates in one matmul, arch weights already folded in.
        z = jnp.dot(h.astype(jnp.bfloat16), wA_ref[idx],
                    preferred_element_type=jnp.float32) + bA_ref[idx]
        return relu_ksum(z, D)                                   # (N, D)

    def merged(idx, h2):
        # Two DAG-parallel MixedOps: block-diagonal matmul on lane-concatenated inputs.
        # Interleaved candidate layout => chunk sum yields [out_A | out_B] directly.
        z = jnp.dot(h2.astype(jnp.bfloat16), wB_ref[idx],
                    preferred_element_type=jnp.float32) + bB_ref[idx]
        return relu_ksum(z, 2 * D)                               # (N, 2D)

    x = x_ref[...]

    # Cell_Zero (branch 0)
    h_in = single(0, x)

    # Cell_First node 0 (branch 1)
    s1 = single(1, h_in)

    # Cell_First node 1 (branches 2 on h_in, 3 on s1) -> s2
    p = merged(0, jnp.concatenate([h_in, s1], axis=1))
    s2 = p[:, 0:D] + p[:, D:2 * D]

    # Cell_Middle (branches 4 on s1, 5 on s2) -> [m1 | m2]
    m12 = merged(1, jnp.concatenate([s1, s2], axis=1))

    # Cell_Last (branches 6 on m1, 7 on m2) -> last
    q = merged(2, m12)
    last = q[:, 0:D] + q[:, D:2 * D]

    # concat(m1, m2, last) -> Linear -> BatchNorm1d -> ReLU (dropout: eval no-op)
    cat = jnp.concatenate([m12, last], axis=1)                   # (N, 3D)
    acc = jnp.dot(cat.astype(jnp.bfloat16), wcat_ref[...],
                  preferred_element_type=jnp.float32)
    o_ref[...] = jnp.maximum(acc + bcat_ref[...], 0.0)


# ------------------------------ wrapper --------------------------------------
def _merge_pair(wt, bias, ia, ib):
    """Block-diagonal merge of two branches with interleaved candidate layout.

    wt   : (NB, D, K*D) arch-folded weights;  bias : (NB, K*D)
    Returns W (2D, K*2D), b (1, K*2D) such that for input [hA | hB]:
      relu([hA|hB] @ W + b) chunk-summed over K (width 2D) == [mixed_A(hA) | mixed_B(hB)].
    """
    D, K = FEAT_DIM, K_OPS
    wa = wt[ia].reshape(D, K, 1, D)
    wb = wt[ib].reshape(D, K, 1, D)
    zero = jnp.zeros_like(wa)
    top = jnp.concatenate([wa, zero], axis=2).reshape(D, K * 2 * D)   # rows for hA
    bot = jnp.concatenate([zero, wb], axis=2).reshape(D, K * 2 * D)   # rows for hB
    W = jnp.concatenate([top, bot], axis=0)                            # (2D, K*2D)
    b = jnp.stack([bias[ia].reshape(K, D), bias[ib].reshape(K, D)],
                  axis=1).reshape(1, K * 2 * D)
    return W, b


def cell_forward_pallas(src_emb, hr, packed, arch):
    """src_emb: (N, D); hr unused (base ops are identity, see TODO)."""
    del hr
    D, K = FEAT_DIM, K_OPS

    # Arch weights of all 8 MixedOps in DAG order: zero, first, middle, last.
    arch_all = jnp.concatenate(
        [arch["zero"], arch["first"], arch["middle"], arch["last"]], axis=0)   # (NB, K)

    # Fold softmax arch weights into the (already BN-folded) candidate Linears.
    # Exact because softmax weights are strictly positive: w*relu(h@W+b) == relu(h@(wW)+wb).
    wt = (packed["wt"].reshape(N_BRANCHES, D, K, D)
          * arch_all[:, None, :, None]).reshape(N_BRANCHES, D, K * D)
    b = (packed["b"].reshape(N_BRANCHES, K, D)
         * arch_all[:, :, None]).reshape(N_BRANCHES, K * D)

    # Single branches 0 (zero) and 1 (first node 0).
    wA = jnp.stack([wt[0], wt[1]], axis=0).astype(jnp.bfloat16)        # (2, D, K*D)
    bA = jnp.stack([b[0], b[1]], axis=0)[:, None, :]                   # (2, 1, K*D)

    # Merged DAG-parallel pairs: (2,3) first node 1, (4,5) middle, (6,7) last.
    pairs = [(2, 3), (4, 5), (6, 7)]
    wBs, bBs = zip(*[_merge_pair(wt, b, ia, ib) for ia, ib in pairs])
    wB = jnp.stack(wBs, axis=0).astype(jnp.bfloat16)                   # (3, 2D, K*2D)
    bB = jnp.stack(bBs, axis=0)                                        # (3, 1, K*2D)

    wcat = packed["wcat"].astype(jnp.bfloat16)                         # (N_CAT*D, D)
    bcat = packed["bcat"][None, :]                                     # (1, D)

    return pl.pallas_call(
        cell_kernel,
        out_shape=jax.ShapeDtypeStruct((src_emb.shape[0], D), jnp.float32),
        in_specs=[pl.BlockSpec(memory_space=pltpu.MemorySpace.VMEM)] * 7,
        out_specs=pl.BlockSpec(memory_space=pltpu.MemorySpace.VMEM),
    )(src_emb, wA, bA, wB, bB, wcat, bcat)


# ----------------------------- parameter setup -------------------------------
def make_linear_bn(key, d_in, d_out):
    ks = jax.random.split(key, 6)
    return dict(
        W=0.1 * jax.random.normal(ks[0], (d_out, d_in), jnp.float32),   # torch Linear [out,in]
        b=0.1 * jax.random.normal(ks[1], (d_out,), jnp.float32),
        gamma=1.0 + 0.1 * jax.random.normal(ks[2], (d_out,), jnp.float32),
        beta=0.1 * jax.random.normal(ks[3], (d_out,), jnp.float32),
        mean=0.1 * jax.random.normal(ks[4], (d_out,), jnp.float32),
        var=1.0 + 0.1 * jax.random.uniform(ks[5], (d_out,), jnp.float32),
    )


def fold_bn(p):
    """Fold inference-mode BatchNorm into the Linear: returns (Wt [Din,Dout], b [Dout])."""
    scale = p["gamma"] / jnp.sqrt(p["var"] + BN_EPS)
    Wt = p["W"].T * scale[None, :]
    b = p["b"] * scale + (p["beta"] - p["mean"] * scale)
    return Wt, b


def make_cell_params(key):
    keys = jax.random.split(key, N_BRANCHES + 1)
    branches = [
        [make_linear_bn(k, FEAT_DIM, FEAT_DIM) for k in jax.random.split(bk, K_OPS)]
        for bk in keys[:N_BRANCHES]
    ]
    concat = make_linear_bn(keys[N_BRANCHES], N_CAT * FEAT_DIM, FEAT_DIM)
    return dict(branches=branches, concat=concat)


def pack_cell_params(params):
    """Fold BN + stack all branches (arch-independent part of packing)."""
    wt_all, b_all = [], []
    for br in params["branches"]:
        wts, bs = zip(*(fold_bn(op) for op in br))
        wt_all.append(jnp.concatenate(wts, axis=1))          # (D, K*D)
        b_all.append(jnp.concatenate(bs, axis=0))            # (K*D,)
    wt_all = jnp.stack(wt_all, axis=0)                       # (NB, D, K*D)
    b_all = jnp.stack(b_all, axis=0)                         # (NB, K*D)
    wt_c, b_c = fold_bn(params["concat"])                    # (N_CAT*D, D), (D,)
    return dict(wt=wt_all, b=b_all, wcat=wt_c, bcat=b_c)


def make_arch_weights(key):
    ks = jax.random.split(key, 4)
    sm = lambda k, n: jax.nn.softmax(
        jax.random.normal(k, (n, K_OPS), jnp.float32), axis=-1)
    return {
        "zero": sm(ks[0], NB_ZERO),
        "first": sm(ks[1], N_FIRST_OPS),
        "middle": sm(ks[2], NB_FIRST),
        "last": sm(ks[3], N_LAST_OPS),
    }


# ------------------------- pure-JAX reference (check) -------------------------
def _mixed_op_ref(w, x, branch):
    out = 0.0
    for k in range(K_OPS):
        p = branch[k]
        z = x @ p["W"].T + p["b"]
        scale = p["gamma"] / jnp.sqrt(p["var"] + BN_EPS)
        z = (z - p["mean"]) * scale + p["beta"]
        z = jnp.maximum(z, 0.0)
        out = out + w[k] * z
    return out


def cell_forward_ref(src_emb, hr, params, arch):
    del hr  # base ops modeled as identity
    branches = params["branches"]
    arch_all = jnp.concatenate(
        [arch["zero"], arch["first"], arch["middle"], arch["last"]], axis=0)
    bi = [0]

    def mixed(x):
        out = _mixed_op_ref(arch_all[bi[0]], x, branches[bi[0]])
        bi[0] += 1
        return out

    h_in = mixed(src_emb)
    states = [h_in]
    for _ in range(NB_FIRST):
        s = None
        for h in states:
            o = mixed(h)
            s = o if s is None else s + o
        states.append(s)
    states = states[1:]
    states = [mixed(states[i]) for i in range(NB_FIRST)]
    for _ in range(NB_LAST):
        s = None
        for h in states:
            o = mixed(h)
            s = o if s is None else s + o
        states.append(s)
    cat = jnp.concatenate(states, axis=1)
    c = params["concat"]
    z = cat @ c["W"].T + c["b"]
    scale = c["gamma"] / jnp.sqrt(c["var"] + BN_EPS)
    z = (z - c["mean"]) * scale + c["beta"]
    return jnp.maximum(z, 0.0)


# ---------------------------------- main --------------------------------------
if __name__ == "__main__":
    key = jax.random.PRNGKey(0)
    k_par, k_arch, k_src, k_hr = jax.random.split(key, 4)

    params = make_cell_params(k_par)
    arch = make_arch_weights(k_arch)
    packed = pack_cell_params(params)

    src_emb = jax.random.normal(k_src, (N_NODES, FEAT_DIM), jnp.float32)
    hr = jax.random.normal(k_hr, (N_NODES, FEAT_DIM), jnp.float32)  # unused (identity base op)

    fwd_pallas = jax.jit(cell_forward_pallas)
    out = jax.block_until_ready(fwd_pallas(src_emb, hr, packed, arch))

    ref = jax.block_until_ready(jax.jit(cell_forward_ref)(src_emb, hr, params, arch))

    assert out.shape == (N_NODES, FEAT_DIM)
    # Tolerance deliberately loosened vs the f32 reference: MXU operands are bf16
    # (single-pass matmuls), element-wise work stays f32.
    max_diff = float(jnp.max(jnp.abs(out - ref)))
    assert jnp.allclose(out, ref, atol=5e-2, rtol=5e-2), (
        f"Pallas output mismatch vs reference, max abs diff = {max_diff}")

    print("KERNEL_OK")
</pallas_src>

<mosaic_0001>
module attributes {stable_mosaic.version = 11 : i64} {
  func.func @cell_kernel(%arg0: memref<8x32xf32, #tpu.memory_space<vmem>>, %arg1: memref<2x32x96xbf16, #tpu.memory_space<vmem>>, %arg2: memref<2x1x96xf32, #tpu.memory_space<vmem>>, %arg3: memref<3x64x192xbf16, #tpu.memory_space<vmem>>, %arg4: memref<3x1x192xf32, #tpu.memory_space<vmem>>, %arg5: memref<96x32xbf16, #tpu.memory_space<vmem>>, %arg6: memref<1x32xf32, #tpu.memory_space<vmem>>, %arg7: memref<8x32xf32, #tpu.memory_space<vmem>>) attributes {dimension_semantics = [], scalar_prefetch = 0 : i64, scratch_operands = 0 : i64, tpu.core_type = #tpu.core_type<tc>} {
    %c0 = arith.constant 0 : index
    %c0_0 = arith.constant 0 : index
    %0 = vector.load %arg0[%c0, %c0_0] : memref<8x32xf32, #tpu.memory_space<vmem>>, vector<8x32xf32>
    %1 = arith.truncf %0 : vector<8x32xf32> to vector<8x32xbf16>
    %c0_1 = arith.constant 0 : index
    %c0_2 = arith.constant 0 : index
    %c0_3 = arith.constant 0 : index
    %2 = vector.load %arg1[%c0_1, %c0_2, %c0_3] : memref<2x32x96xbf16, #tpu.memory_space<vmem>>, vector<1x32x96xbf16>
    %3 = vector.shape_cast %2 : vector<1x32x96xbf16> to vector<32x96xbf16>
    %cst = arith.constant dense<0.000000e+00> : vector<8x96xf32>
    %4 = tpu.matmul %1, %3, %cst {dimension_numbers = #tpu.dot_dimension_numbers<[1], [0], [0], [1], [0, 0, 1, 1], [], []>} : vector<8x32xbf16>, vector<32x96xbf16>, vector<8x96xf32> -> vector<8x96xf32>
    %c0_4 = arith.constant 0 : index
    %c0_5 = arith.constant 0 : index
    %c0_6 = arith.constant 0 : index
    %5 = vector.load %arg2[%c0_4, %c0_5, %c0_6] : memref<2x1x96xf32, #tpu.memory_space<vmem>>, vector<1x1x96xf32>
    %6 = vector.shape_cast %5 : vector<1x1x96xf32> to vector<1x96xf32>
    %7 = vector.broadcast %6 : vector<1x96xf32> to vector<8x96xf32>
    %8 = arith.addf %4, %7 : vector<8x96xf32>
    %cst_7 = arith.constant 0.000000e+00 : f32
    %9 = vector.broadcast %cst_7 : f32 to vector<8x96xf32>
    %10 = arith.maximumf %8, %9 : vector<8x96xf32>
    %11 = vector.extract_strided_slice %10 {offsets = [0, 0], sizes = [8, 32], strides = [1, 1]} : vector<8x96xf32> to vector<8x32xf32>
    %12 = vector.extract_strided_slice %10 {offsets = [0, 32], sizes = [8, 32], strides = [1, 1]} : vector<8x96xf32> to vector<8x32xf32>
    %13 = arith.addf %11, %12 : vector<8x32xf32>
    %14 = vector.extract_strided_slice %10 {offsets = [0, 64], sizes = [8, 32], strides = [1, 1]} : vector<8x96xf32> to vector<8x32xf32>
    %15 = arith.addf %13, %14 : vector<8x32xf32>
    %16 = arith.truncf %15 : vector<8x32xf32> to vector<8x32xbf16>
    %c1 = arith.constant 1 : index
    %c0_8 = arith.constant 0 : index
    %c0_9 = arith.constant 0 : index
    %17 = vector.load %arg1[%c1, %c0_8, %c0_9] : memref<2x32x96xbf16, #tpu.memory_space<vmem>>, vector<1x32x96xbf16>
    %18 = vector.shape_cast %17 : vector<1x32x96xbf16> to vector<32x96xbf16>
    %cst_10 = arith.constant dense<0.000000e+00> : vector<8x96xf32>
    %19 = tpu.matmul %16, %18, %cst_10 {dimension_numbers = #tpu.dot_dimension_numbers<[1], [0], [0], [1], [0, 0, 1, 1], [], []>} : vector<8x32xbf16>, vector<32x96xbf16>, vector<8x96xf32> -> vector<8x96xf32>
    %c1_11 = arith.constant 1 : index
    %c0_12 = arith.constant 0 : index
    %c0_13 = arith.constant 0 : index
    %20 = vector.load %arg2[%c1_11, %c0_12, %c0_13] : memref<2x1x96xf32, #tpu.memory_space<vmem>>, vector<1x1x96xf32>
    %21 = vector.shape_cast %20 : vector<1x1x96xf32> to vector<1x96xf32>
    %22 = vector.broadcast %21 : vector<1x96xf32> to vector<8x96xf32>
    %23 = arith.addf %19, %22 : vector<8x96xf32>
    %cst_14 = arith.constant 0.000000e+00 : f32
    %24 = vector.broadcast %cst_14 : f32 to vector<8x96xf32>
    %25 = arith.maximumf %23, %24 : vector<8x96xf32>
    %26 = vector.extract_strided_slice %25 {offsets = [0, 0], sizes = [8, 32], strides = [1, 1]} : vector<8x96xf32> to vector<8x32xf32>
    %27 = vector.extract_strided_slice %25 {offsets = [0, 32], sizes = [8, 32], strides = [1, 1]} : vector<8x96xf32> to vector<8x32xf32>
    %28 = arith.addf %26, %27 : vector<8x32xf32>
    %29 = vector.extract_strided_slice %25 {offsets = [0, 64], sizes = [8, 32], strides = [1, 1]} : vector<8x96xf32> to vector<8x32xf32>
    %30 = arith.addf %28, %29 : vector<8x32xf32>
    %31 = tpu.concatenate %15, %30 in 1 : vector<8x32xf32>, vector<8x32xf32> -> vector<8x64xf32>
    %32 = arith.truncf %31 : vector<8x64xf32> to vector<8x64xbf16>
    %c0_15 = arith.constant 0 : index
    %c0_16 = arith.constant 0 : index
    %c0_17 = arith.constant 0 : index
    %33 = vector.load %arg3[%c0_15, %c0_16, %c0_17] : memref<3x64x192xbf16, #tpu.memory_space<vmem>>, vector<1x64x192xbf16>
    %34 = vector.shape_cast %33 : vector<1x64x192xbf16> to vector<64x192xbf16>
    %cst_18 = arith.constant dense<0.000000e+00> : vector<8x192xf32>
    %35 = tpu.matmul %32, %34, %cst_18 {dimension_numbers = #tpu.dot_dimension_numbers<[1], [0], [0], [1], [0, 0, 1, 1], [], []>} : vector<8x64xbf16>, vector<64x192xbf16>, vector<8x192xf32> -> vector<8x192xf32>
    %c0_19 = arith.constant 0 : index
    %c0_20 = arith.constant 0 : index
    %c0_21 = arith.constant 0 : index
    %36 = vector.load %arg4[%c0_19, %c0_20, %c0_21] : memref<3x1x192xf32, #tpu.memory_space<vmem>>, vector<1x1x192xf32>
    %37 = vector.shape_cast %36 : vector<1x1x192xf32> to vector<1x192xf32>
    %38 = vector.broadcast %37 : vector<1x192xf32> to vector<8x192xf32>
    %39 = arith.addf %35, %38 : vector<8x192xf32>
    %cst_22 = arith.constant 0.000000e+00 : f32
    %40 = vector.broadcast %cst_22 : f32 to vector<8x192xf32>
    %41 = arith.maximumf %39, %40 : vector<8x192xf32>
    %42 = vector.extract_strided_slice %41 {offsets = [0, 0], sizes = [8, 64], strides = [1, 1]} : vector<8x192xf32> to vector<8x64xf32>
    %43 = vector.extract_strided_slice %41 {offsets = [0, 64], sizes = [8, 64], strides = [1, 1]} : vector<8x192xf32> to vector<8x64xf32>
    %44 = arith.addf %42, %43 : vector<8x64xf32>
    %45 = vector.extract_strided_slice %41 {offsets = [0, 128], sizes = [8, 64], strides = [1, 1]} : vector<8x192xf32> to vector<8x64xf32>
    %46 = arith.addf %44, %45 : vector<8x64xf32>
    %47 = vector.extract_strided_slice %46 {offsets = [0, 0], sizes = [8, 32], strides = [1, 1]} : vector<8x64xf32> to vector<8x32xf32>
    %48 = vector.extract_strided_slice %46 {offsets = [0, 32], sizes = [8, 32], strides = [1, 1]} : vector<8x64xf32> to vector<8x32xf32>
    %49 = arith.addf %47, %48 : vector<8x32xf32>
    %50 = tpu.concatenate %30, %49 in 1 : vector<8x32xf32>, vector<8x32xf32> -> vector<8x64xf32>
    %51 = arith.truncf %50 : vector<8x64xf32> to vector<8x64xbf16>
    %c1_23 = arith.constant 1 : index
    %c0_24 = arith.constant 0 : index
    %c0_25 = arith.constant 0 : index
    %52 = vector.load %arg3[%c1_23, %c0_24, %c0_25] : memref<3x64x192xbf16, #tpu.memory_space<vmem>>, vector<1x64x192xbf16>
    %53 = vector.shape_cast %52 : vector<1x64x192xbf16> to vector<64x192xbf16>
    %cst_26 = arith.constant dense<0.000000e+00> : vector<8x192xf32>
    %54 = tpu.matmul %51, %53, %cst_26 {dimension_numbers = #tpu.dot_dimension_numbers<[1], [0], [0], [1], [0, 0, 1, 1], [], []>} : vector<8x64xbf16>, vector<64x192xbf16>, vector<8x192xf32> -> vector<8x192xf32>
    %c1_27 = arith.constant 1 : index
    %c0_28 = arith.constant 0 : index
    %c0_29 = arith.constant 0 : index
    %55 = vector.load %arg4[%c1_27, %c0_28, %c0_29] : memref<3x1x192xf32, #tpu.memory_space<vmem>>, vector<1x1x192xf32>
    %56 = vector.shape_cast %55 : vector<1x1x192xf32> to vector<1x192xf32>
    %57 = vector.broadcast %56 : vector<1x192xf32> to vector<8x192xf32>
    %58 = arith.addf %54, %57 : vector<8x192xf32>
    %cst_30 = arith.constant 0.000000e+00 : f32
    %59 = vector.broadcast %cst_30 : f32 to vector<8x192xf32>
    %60 = arith.maximumf %58, %59 : vector<8x192xf32>
    %61 = vector.extract_strided_slice %60 {offsets = [0, 0], sizes = [8, 64], strides = [1, 1]} : vector<8x192xf32> to vector<8x64xf32>
    %62 = vector.extract_strided_slice %60 {offsets = [0, 64], sizes = [8, 64], strides = [1, 1]} : vector<8x192xf32> to vector<8x64xf32>
    %63 = arith.addf %61, %62 : vector<8x64xf32>
    %64 = vector.extract_strided_slice %60 {offsets = [0, 128], sizes = [8, 64], strides = [1, 1]} : vector<8x192xf32> to vector<8x64xf32>
    %65 = arith.addf %63, %64 : vector<8x64xf32>
    %66 = arith.truncf %65 : vector<8x64xf32> to vector<8x64xbf16>
    %c2 = arith.constant 2 : index
    %c0_31 = arith.constant 0 : index
    %c0_32 = arith.constant 0 : index
    %67 = vector.load %arg3[%c2, %c0_31, %c0_32] : memref<3x64x192xbf16, #tpu.memory_space<vmem>>, vector<1x64x192xbf16>
    %68 = vector.shape_cast %67 : vector<1x64x192xbf16> to vector<64x192xbf16>
    %cst_33 = arith.constant dense<0.000000e+00> : vector<8x192xf32>
    %69 = tpu.matmul %66, %68, %cst_33 {dimension_numbers = #tpu.dot_dimension_numbers<[1], [0], [0], [1], [0, 0, 1, 1], [], []>} : vector<8x64xbf16>, vector<64x192xbf16>, vector<8x192xf32> -> vector<8x192xf32>
    %c2_34 = arith.constant 2 : index
    %c0_35 = arith.constant 0 : index
    %c0_36 = arith.constant 0 : index
    %70 = vector.load %arg4[%c2_34, %c0_35, %c0_36] : memref<3x1x192xf32, #tpu.memory_space<vmem>>, vector<1x1x192xf32>
    %71 = vector.shape_cast %70 : vector<1x1x192xf32> to vector<1x192xf32>
    %72 = vector.broadcast %71 : vector<1x192xf32> to vector<8x192xf32>
    %73 = arith.addf %69, %72 : vector<8x192xf32>
    %cst_37 = arith.constant 0.000000e+00 : f32
    %74 = vector.broadcast %cst_37 : f32 to vector<8x192xf32>
    %75 = arith.maximumf %73, %74 : vector<8x192xf32>
    %76 = vector.extract_strided_slice %75 {offsets = [0, 0], sizes = [8, 64], strides = [1, 1]} : vector<8x192xf32> to vector<8x64xf32>
    %77 = vector.extract_strided_slice %75 {offsets = [0, 64], sizes = [8, 64], strides = [1, 1]} : vector<8x192xf32> to vector<8x64xf32>
    %78 = arith.addf %76, %77 : vector<8x64xf32>
    %79 = vector.extract_strided_slice %75 {offsets = [0, 128], sizes = [8, 64], strides = [1, 1]} : vector<8x192xf32> to vector<8x64xf32>
    %80 = arith.addf %78, %79 : vector<8x64xf32>
    %81 = vector.extract_strided_slice %80 {offsets = [0, 0], sizes = [8, 32], strides = [1, 1]} : vector<8x64xf32> to vector<8x32xf32>
    %82 = vector.extract_strided_slice %80 {offsets = [0, 32], sizes = [8, 32], strides = [1, 1]} : vector<8x64xf32> to vector<8x32xf32>
    %83 = arith.addf %81, %82 : vector<8x32xf32>
    %84 = tpu.concatenate %65, %83 in 1 : vector<8x64xf32>, vector<8x32xf32> -> vector<8x96xf32>
    %85 = arith.truncf %84 : vector<8x96xf32> to vector<8x96xbf16>
    %c0_38 = arith.constant 0 : index
    %c0_39 = arith.constant 0 : index
    %86 = vector.load %arg5[%c0_38, %c0_39] : memref<96x32xbf16, #tpu.memory_space<vmem>>, vector<96x32xbf16>
    %cst_40 = arith.constant dense<0.000000e+00> : vector<8x32xf32>
    %87 = tpu.matmul %85, %86, %cst_40 {dimension_numbers = #tpu.dot_dimension_numbers<[1], [0], [0], [1], [0, 0, 1, 1], [], []>} : vector<8x96xbf16>, vector<96x32xbf16>, vector<8x32xf32> -> vector<8x32xf32>
    %c0_41 = arith.constant 0 : index
    %c0_42 = arith.constant 0 : index
    %88 = vector.load %arg6[%c0_41, %c0_42] : memref<1x32xf32, #tpu.memory_space<vmem>>, vector<1x32xf32>
    %89 = vector.broadcast %88 : vector<1x32xf32> to vector<8x32xf32>
    %90 = arith.addf %87, %89 : vector<8x32xf32>
    %cst_43 = arith.constant 0.000000e+00 : f32
    %91 = vector.broadcast %cst_43 : f32 to vector<8x32xf32>
    %92 = arith.maximumf %90, %91 : vector<8x32xf32>
    %c0_44 = arith.constant 0 : index
    %c0_45 = arith.constant 0 : index
    %93 = vector.load %arg7[%c0_44, %c0_45] : memref<8x32xf32, #tpu.memory_space<vmem>>, vector<8x32xf32>
    tpu.vector_store %arg7[%c0_44, %c0_45], %92 {strides = array<i32>} : memref<8x32xf32, #tpu.memory_space<vmem>>, vector<8x32xf32>,
    return
  }
}

</mosaic_0001>

<llo_original>
// kernel: mul.1
$region0: #{mul.1}
  #allocation0 [shape = 's32[1]{0}', space=sflag, size = 0x4, scoped, tag = 'scoped memory for mul.1']
  %s0 = inlined_call_operand.vmem [shape: f32[8,96], index: 0, kind: input, shape index: {}]
  %s1 = inlined_call_operand.vmem [shape: f32[8,96], index: 1, kind: input, shape index: {}]
  %s2 = inlined_call_operand.vmem [shape: f32[8,96], index: 2, kind: output, shape index: {}]
  %v3 = vld [vmem:[%s0] sm:$0xff]
  %v4 = vld [vmem:[%s1] sm:$0xff]
  %5 = xla_tuple %v3, %v4
  %6 = xla_tuple %5
  %v7 = vmul.f32 %v3, %v4
  %8 = xla_tuple %v7
  %9 = vst [vmem:[%s2] sm:$0xff] %v7

// kernel: squeeze.11
$region0: #{squeeze.11}
  %s0 = inlined_call_operand.vmem [shape: bf16[1,32,96], index: 0, kind: input, shape index: {}]
  %s1 = inlined_call_operand.vmem [shape: bf16[32,3,1,32], index: 1, kind: output, shape index: {}]
  $region1: #{squeeze.11} parent=0
    #allocation0 [shape = 'u8[393216]{0}', space=vmem, size = 0x60000, scoped, tag = 'scoped mem for output reshape']
    #allocation1 [shape = 'u8[16384]{0}', space=vmem, size = 0x4000, scoped, tag = 'scoped mem for input reshape']
    %s3 = smul.u32 4, 2
    %s4 = sshllo.u32 0, %s3
    %s5 = smul.addr 4, 3
    %s6 = scalar_lea.vmem %s0, %s5
    %s7 = sshrl.u32 %s4, 1
    %s8 = sor.u32 %s4, %s7
    %s9 = sand.u32 %s8, 85
    %s10 = sshrl.u32 %s9, 1
    %s11 = sor.u32 %s9, %s10
    %s12 = sand.u32 51, %s11
    %s13 = sshrl.u32 %s12, 2
    %s14 = sor.u32 %s12, %s13
    %s15 = sand.u32 15, %s14
    %v16 = vld [vmem:[%s6] sm:%s15]
    %v17 = vunpack.c.l.bf16 %v16
    %v18 = vunpack.c.h.bf16 %v16
    %s19 = scalar_lea.vmem [#allocation1], 24
    %20 = vst [vmem:[%s19] sm:%s4] %v17
    %s21 = smul.addr 4, 2
    %s22 = scalar_lea.vmem %s0, %s21
    %s23 = sshrl.u32 %s4, 1
    %s24 = sor.u32 %s4, %s23
    %s25 = sand.u32 %s24, 85
    %s26 = sshrl.u32 %s25, 1
    %s27 = sor.u32 %s25, %s26
    %s28 = sand.u32 51, %s27
    %s29 = sshrl.u32 %s28, 2
    %s30 = sor.u32 %s28, %s29
    %s31 = sand.u32 15, %s30
    %v32 = vld [vmem:[%s22] sm:%s31]
    %v33 = vunpack.c.l.bf16 %v32
    %v34 = vunpack.c.h.bf16 %v32
    %s35 = scalar_lea.vmem [#allocation1], 16
    %36 = vst [vmem:[%s35] sm:%s4] %v33
    %s37 = scalar_lea.vmem %s0, 4
    %s38 = sshrl.u32 %s4, 1
    %s39 = sor.u32 %s4, %s38
    %s40 = sand.u32 %s39, 85
    %s41 = sshrl.u32 %s40, 1
    %s42 = sor.u32 %s40, %s41
    %s43 = sand.u32 51, %s42
    %s44 = sshrl.u32 %s43, 2
    %s45 = sor.u32 %s43, %s44
    %s46 = sand.u32 15, %s45
    %v47 = vld [vmem:[%s37] sm:%s46]
    %v48 = vunpack.c.l.bf16 %v47
    %v49 = vunpack.c.h.bf16 %v47
    %s50 = scalar_lea.vmem [#allocation1], 8
    %51 = vst [vmem:[%s50] sm:%s4] %v48
    %s52 = sshrl.u32 %s4, 1
    %s53 = sor.u32 %s4, %s52
    %s54 = sand.u32 %s53, 85
    %s55 = sshrl.u32 %s54, 1
    %s56 = sor.u32 %s54, %s55
    %s57 = sand.u32 51, %s56
    %s58 = sshrl.u32 %s57, 2
    %s59 = sor.u32 %s57, %s58
    %s60 = sand.u32 15, %s59
    %v61 = vld [vmem:[%s0] sm:%s60]
    %v62 = vunpack.c.l.bf16 %v61
    %v63 = vunpack.c.h.bf16 %v61
    %64 = vst [vmem:[#allocation1] sm:%s4] %v62
    %v65 = vld [vmem:[#allocation1] sm:$0xff]
    %vm66 = vcmask 261120
    %67 = vst.msk [vmem:[#allocation0] ss:$24 sm:$0xf] %vm66, %v65
    %68 = vst.msk [vmem:[#allocation0] ss:$24 sm:$0xf0] %vm66, %v65
    %s69 = scalar_lea.vmem [#allocation1], 8
    %v70 = vld [vmem:[%s69] sm:$0xff]
    %vm71 = vcmask 261120
    %s72 = scalar_lea.vmem [#allocation0], 192
    %73 = vst.msk [vmem:[%s72] ss:$24 sm:$0xf] %vm71, %v70
    %s74 = scalar_lea.vmem [#allocation0], 192
    %75 = vst.msk [vmem:[%s74] ss:$24 sm:$0xf0] %vm71, %v70
    %s76 = scalar_lea.vmem [#allocation1], 16
    %v77 = vld [vmem:[%s76] sm:$0xff]
    %vm78 = vcmask 261120
    %s79 = scalar_lea.vmem [#allocation0], 384
    %80 = vst.msk [vmem:[%s79] ss:$24 sm:$0xf] %vm78, %v77
    %s81 = scalar_lea.vmem [#allocation0], 384
    %82 = vst.msk [vmem:[%s81] ss:$24 sm:$0xf0] %vm78, %v77
    %s83 = scalar_lea.vmem [#allocation1], 24
    %v84 = vld [vmem:[%s83] sm:$0xff]
    %vm85 = vcmask 261120
    %s86 = scalar_lea.vmem [#allocation0], 576
    %87 = vst.msk [vmem:[%s86] ss:$24 sm:$0xf] %vm85, %v84
    %s88 = scalar_lea.vmem [#allocation0], 576
    %89 = vst.msk [vmem:[%s88] ss:$24 sm:$0xf0] %vm85, %v84
    %v90 = vld.sshfl [vmem:[#allocation1] sm:$0xff pattern:$0x67452301]
    %91 = vrot.lane.b32.xlu0 %v90, 96
    %v92 = vpop.permute.xlu0 %91
    %vm93 = vcmask 261120
    %s94 = scalar_lea.vmem [#allocation0], 32
    %95 = vst.msk [vmem:[%s94] ss:$-24 sm:$0x3] %vm93, %v92
    %s96 = scalar_lea.vmem [#allocation0], 128
    %97 = vst.msk [vmem:[%s96] ss:$-24 sm:$0xc] %vm93, %v92
    %s98 = scalar_lea.vmem [#allocation0], 224
    %99 = vst.msk [vmem:[%s98] ss:$-24 sm:$0x30] %vm93, %v92
    %s100 = scalar_lea.vmem [#allocation0], 320
    %101 = vst.msk [vmem:[%s100] ss:$-24 sm:$0xc0] %vm93, %v92
    %s102 = scalar_lea.vmem [#allocation1], 8
    %v103 = vld.sshfl [vmem:[%s102] sm:$0xff pattern:$0x67452301]
    %104 = vrot.lane.b32.xlu0 %v103, 96
    %v105 = vpop.permute.xlu0 %104
    %vm106 = vcmask 261120
    %s107 = scalar_lea.vmem [#allocation0], 224
    %108 = vst.msk [vmem:[%s107] ss:$-24 sm:$0x3] %vm106, %v105
    %s109 = scalar_lea.vmem [#allocation0], 320
    %110 = vst.msk [vmem:[%s109] ss:$-24 sm:$0xc] %vm106, %v105
    %s111 = scalar_lea.vmem [#allocation0], 416
    %112 = vst.msk [vmem:[%s111] ss:$-24 sm:$0x30] %vm106, %v105
    %s113 = scalar_lea.vmem [#allocation0], 512
    %114 = vst.msk [vmem:[%s113] ss:$-24 sm:$0xc0] %vm106, %v105
    %s115 = scalar_lea.vmem [#allocation1], 16
    %v116 = vld.sshfl [vmem:[%s115] sm:$0xff pattern:$0x67452301]
    %117 = vrot.lane.b32.xlu0 %v116, 96
    %v118 = vpop.permute.xlu0 %117
    %vm119 = vcmask 261120
    %s120 = scalar_lea.vmem [#allocation0], 416
    %121 = vst.msk [vmem:[%s120] ss:$-24 sm:$0x3] %vm119, %v118
    %s122 = scalar_lea.vmem [#allocation0], 512
    %123 = vst.msk [vmem:[%s122] ss:$-24 sm:$0xc] %vm119, %v118
    %s124 = scalar_lea.vmem [#allocation0], 608
    %125 = vst.msk [vmem:[%s124] ss:$-24 sm:$0x30] %vm119, %v118
    %s126 = scalar_lea.vmem [#allocation0], 704
    %127 = vst.msk [vmem:[%s126] ss:$-24 sm:$0xc0] %vm119, %v118
    %s128 = scalar_lea.vmem [#allocation1], 24
    %v129 = vld.sshfl [vmem:[%s128] sm:$0xff pattern:$0x67452301]
    %130 = vrot.lane.b32.xlu0 %v129, 96
    %v131 = vpop.permute.xlu0 %130
    %vm132 = vcmask 261120
    %s133 = scalar_lea.vmem [#allocation0], 608
    %134 = vst.msk [vmem:[%s133] ss:$-24 sm:$0x3] %vm132, %v131
    %s135 = scalar_lea.vmem [#allocation0], 704
    %136 = vst.msk [vmem:[%s135] ss:$-24 sm:$0xc] %vm132, %v131
    %s137 = scalar_lea.vmem [#allocation0], 800
    %138 = vst.msk [vmem:[%s137] ss:$-24 sm:$0x30] %vm132, %v131
    %s139 = scalar_lea.vmem [#allocation0], 896
    %140 = vst.msk [vmem:[%s139] ss:$-24 sm:$0xc0] %vm132, %v131
    %v141 = vld.sshfl [vmem:[#allocation1] sm:$0xff pattern:$0x74563012]
    %142 = vrot.lane.b32.xlu0 %v141, 64
    %v143 = vpop.permute.xlu0 %142
    %vm144 = vcmask 261120
    %s145 = scalar_lea.vmem [#allocation0], 64
    %146 = vst.msk [vmem:[%s145] ss:$-24 sm:$0x7] %vm144, %v143
    %s147 = scalar_lea.vmem [#allocation0], 4294967168
    %148 = vst.msk [vmem:[%s147] ss:$72 sm:$0x18] %vm144, %v143
    %s149 = scalar_lea.vmem [#allocation0], 256
    %150 = vst.msk [vmem:[%s149] ss:$-24 sm:$0x60] %vm144, %v143
    %s151 = scalar_lea.vmem [#allocation0], 177
    %152 = vst.msk [vmem:[%s151] sm:$0x80] %vm144, %v143
    %s153 = scalar_lea.vmem [#allocation1], 8
    %v154 = vld.sshfl [vmem:[%s153] sm:$0xff pattern:$0x74563012]
    %155 = vrot.lane.b32.xlu0 %v154, 64
    %v156 = vpop.permute.xlu0 %155
    %vm157 = vcmask 261120
    %s158 = scalar_lea.vmem [#allocation0], 256
    %159 = vst.msk [vmem:[%s158] ss:$-24 sm:$0x7] %vm157, %v156
    %s160 = scalar_lea.vmem [#allocation0], 64
    %161 = vst.msk [vmem:[%s160] ss:$72 sm:$0x18] %vm157, %v156
    %s162 = scalar_lea.vmem [#allocation0], 448
    %163 = vst.msk [vmem:[%s162] ss:$-24 sm:$0x60] %vm157, %v156
    %s164 = scalar_lea.vmem [#allocation0], 369
    %165 = vst.msk [vmem:[%s164] sm:$0x80] %vm157, %v156
    %s166 = scalar_lea.vmem [#allocation1], 16
    %v167 = vld.sshfl [vmem:[%s166] sm:$0xff pattern:$0x74563012]
    %168 = vrot.lane.b32.xlu0 %v167, 64
    %v169 = vpop.permute.xlu0 %168
    %vm170 = vcmask 261120
    %s171 = scalar_lea.vmem [#allocation0], 448
    %172 = vst.msk [vmem:[%s171] ss:$-24 sm:$0x7] %vm170, %v169
    %s173 = scalar_lea.vmem [#allocation0], 256
    %174 = vst.msk [vmem:[%s173] ss:$72 sm:$0x18] %vm170, %v169
    %s175 = scalar_lea.vmem [#allocation0], 640
    %176 = vst.msk [vmem:[%s175] ss:$-24 sm:$0x60] %vm170, %v169
    %s177 = scalar_lea.vmem [#allocation0], 561
    %178 = vst.msk [vmem:[%s177] sm:$0x80] %vm170, %v169
    %s179 = scalar_lea.vmem [#allocation1], 24
    %v180 = vld.sshfl [vmem:[%s179] sm:$0xff pattern:$0x74563012]
    %181 = vrot.lane.b32.xlu0 %v180, 64
    %v182 = vpop.permute.xlu0 %181
    %vm183 = vcmask 261120
    %s184 = scalar_lea.vmem [#allocation0], 640
    %185 = vst.msk [vmem:[%s184] ss:$-24 sm:$0x7] %vm183, %v182
    %s186 = scalar_lea.vmem [#allocation0], 448
    %187 = vst.msk [vmem:[%s186] ss:$72 sm:$0x18] %vm183, %v182
    %s188 = scalar_lea.vmem [#allocation0], 832
    %189 = vst.msk [vmem:[%s188] ss:$-24 sm:$0x60] %vm183, %v182
    %s190 = scalar_lea.vmem [#allocation0], 753
    %191 = vst.msk [vmem:[%s190] sm:$0x80] %vm183, %v182
    %s193 = smul.u32 1, 2
    %s194 = sshllo.u32 0, %s193
    %s195 = sshrl.u32 %s193, 1
    %v196 = vld [vmem:[#allocation0] sm:%s194]
    %v197 = vpack.c.bf16 0.0, %v196
    %s198 = sshllo.u32 0, %s195
    %199 = vst [vmem:[%s1] sm:%s198] %v197
    %s200 = scalar_lea.vmem [#allocation0], 8
    %v201 = vld [vmem:[%s200] sm:%s194]
    %v202 = vpack.c.bf16 0.0, %v201
    %s203 = sshllo.u32 0, %s195
    %s204 = scalar_lea.vmem %s1, 1
    %205 = vst [vmem:[%s204] sm:%s203] %v202
    %s206 = scalar_lea.vmem [#allocation0], 16
    %v207 = vld [vmem:[%s206] sm:%s194]
    %v208 = vpack.c.bf16 0.0, %v207
    %s209 = sshllo.u32 0, %s195
    %s210 = smul.addr 1, 2
    %s211 = scalar_lea.vmem %s1, %s210
    %212 = vst [vmem:[%s211] sm:%s209] %v208
    %s213 = scalar_lea.vmem [#allocation0], 24
    %v214 = vld [vmem:[%s213] sm:%s194]
    %v215 = vpack.c.bf16 0.0, %v214
    %s216 = sshllo.u32 0, %s195
    %s217 = smul.addr 1, 3
    %s218 = scalar_lea.vmem %s1, %s217
    %219 = vst [vmem:[%s218] sm:%s216] %v215
    %s220 = scalar_lea.vmem [#allocation0], 32
    %v221 = vld [vmem:[%s220] sm:%s194]
    %v222 = vpack.c.bf16 0.0, %v221
    %s223 = sshllo.u32 0, %s195
    %s224 = smul.addr 1, 4
    %s225 = scalar_lea.vmem %s1, %s224
    %226 = vst [vmem:[%s225] sm:%s223] %v222
    %s227 = scalar_lea.vmem [#allocation0], 40
    %v228 = vld [vmem:[%s227] sm:%s194]
    %v229 = vpack.c.bf16 0.0, %v228
    %s230 = sshllo.u32 0, %s195
    %s231 = smul.addr 1, 5
    %s232 = scalar_lea.vmem %s1, %s231
    %233 = vst [vmem:[%s232] sm:%s230] %v229
    %s234 = scalar_lea.vmem [#allocation0], 48
    %v235 = vld [vmem:[%s234] sm:%s194]
    %v236 = vpack.c.bf16 0.0, %v235
    %s237 = sshllo.u32 0, %s195
    %s238 = smul.addr 1, 6
    %s239 = scalar_lea.vmem %s1, %s238
    %240 = vst [vmem:[%s239] sm:%s237] %v236
    %s241 = scalar_lea.vmem [#allocation0], 56
    %v242 = vld [vmem:[%s241] sm:%s194]
    %v243 = vpack.c.bf16 0.0, %v242
    %s244 = sshllo.u32 0, %s195
    %s245 = smul.addr 1, 7
    %s246 = scalar_lea.vmem %s1, %s245
    %247 = vst [vmem:[%s246] sm:%s244] %v243
    %s248 = scalar_lea.vmem [#allocation0], 64
    %v249 = vld [vmem:[%s248] sm:%s194]
    %v250 = vpack.c.bf16 0.0, %v249
    %s251 = sshllo.u32 0, %s195
    %s252 = smul.addr 1, 8
    %s253 = scalar_lea.vmem %s1, %s252
    %254 = vst [vmem:[%s253] sm:%s251] %v250
    %s255 = scalar_lea.vmem [#allocation0], 72
    %v256 = vld [vmem:[%s255] sm:%s194]
    %v257 = vpack.c.bf16 0.0, %v256
    %s258 = sshllo.u32 0, %s195
    %s259 = smul.addr 1, 9
    %s260 = scalar_lea.vmem %s1, %s259
    %261 = vst [vmem:[%s260] sm:%s258] %v257
    %s262 = scalar_lea.vmem [#allocation0], 80
    %v263 = vld [vmem:[%s262] sm:%s194]
    %v264 = vpack.c.bf16 0.0, %v263
    %s265 = sshllo.u32 0, %s195
    %s266 = smul.addr 1, 10
    %s267 = scalar_lea.vmem %s1, %s266
    %268 = vst [vmem:[%s267] sm:%s265] %v264
    %s269 = scalar_lea.vmem [#allocation0], 88
    %v270 = vld [vmem:[%s269] sm:%s194]
    %v271 = vpack.c.bf16 0.0, %v270
    %s272 = sshllo.u32 0, %s195
    %s273 = smul.addr 1, 11
    %s274 = scalar_lea.vmem %s1, %s273
    %275 = vst [vmem:[%s274] sm:%s272] %v271
    %s276 = scalar_lea.vmem [#allocation0], 96
    %v277 = vld [vmem:[%s276] sm:%s194]
    %v278 = vpack.c.bf16 0.0, %v277
    %s279 = sshllo.u32 0, %s195
    %s280 = smul.addr 1, 12
    %s281 = scalar_lea.vmem %s1, %s280
    %282 = vst [vmem:[%s281] sm:%s279] %v278
    %s283 = scalar_lea.vmem [#allocation0], 104
    %v284 = vld [vmem:[%s283] sm:%s194]
    %v285 = vpack.c.bf16 0.0, %v284
    %s286 = sshllo.u32 0, %s195
    %s287 = smul.addr 1, 13
    %s288 = scalar_lea.vmem %s1, %s287
    %289 = vst [vmem:[%s288] sm:%s286] %v285
    %s290 = scalar_lea.vmem [#allocation0], 112
    %v291 = vld [vmem:[%s290] sm:%s194]
    %v292 = vpack.c.bf16 0.0, %v291
    %s293 = sshllo.u32 0, %s195
    %s294 = smul.addr 1, 14
    %s295 = scalar_lea.vmem %s1, %s294
    %296 = vst [vmem:[%s295] sm:%s293] %v292
    %s297 = scalar_lea.vmem [#allocation0], 120
    %v298 = vld [vmem:[%s297] sm:%s194]
    %v299 = vpack.c.bf16 0.0, %v298
    %s300 = sshllo.u32 0, %s195
    %s301 = smul.addr 1, 15
    %s302 = scalar_lea.vmem %s1, %s301
    %303 = vst [vmem:[%s302] sm:%s300] %v299
    %s304 = scalar_lea.vmem [#allocation0], 128
    %v305 = vld [vmem:[%s304] sm:%s194]
    %v306 = vpack.c.bf16 0.0, %v305
    %s307 = sshllo.u32 0, %s195
    %s308 = smul.addr 1, 16
    %s309 = scalar_lea.vmem %s1, %s308
    %310 = vst [vmem:[%s309] sm:%s307] %v306
    %s311 = scalar_lea.vmem [#allocation0], 136
    %v312 = vld [vmem:[%s311] sm:%s194]
    %v313 = vpack.c.bf16 0.0, %v312
    %s314 = sshllo.u32 0, %s195
    %s315 = smul.addr 1, 17
    %s316 = scalar_lea.vmem %s1, %s315
    %317 = vst [vmem:[%s316] sm:%s314] %v313
    %s318 = scalar_lea.vmem [#allocation0], 144
    %v319 = vld [vmem:[%s318] sm:%s194]
    %v320 = vpack.c.bf16 0.0, %v319
    %s321 = sshllo.u32 0, %s195
    %s322 = smul.addr 1, 18
    %s323 = scalar_lea.vmem %s1, %s322
    %324 = vst [vmem:[%s323] sm:%s321] %v320
    %s325 = scalar_lea.vmem [#allocation0], 152
    %v326 = vld [vmem:[%s325] sm:%s194]
    %v327 = vpack.c.bf16 0.0, %v326
    %s328 = sshllo.u32 0, %s195
    %s329 = smul.addr 1, 19
    %s330 = scalar_lea.vmem %s1, %s329
    %331 = vst [vmem:[%s330] sm:%s328] %v327
    %s332 = scalar_lea.vmem [#allocation0], 160
    %v333 = vld [vmem:[%s332] sm:%s194]
    %v334 = vpack.c.bf16 0.0, %v333
    %s335 = sshllo.u32 0, %s195
    %s336 = smul.addr 1, 20
    %s337 = scalar_lea.vmem %s1, %s336
    %338 = vst [vmem:[%s337] sm:%s335] %v334
    %s339 = scalar_lea.vmem [#allocation0], 168
    %v340 = vld [vmem:[%s339] sm:%s194]
    %v341 = vpack.c.bf16 0.0, %v340
    %s342 = sshllo.u32 0, %s195
    %s343 = smul.addr 1, 21
    %s344 = scalar_lea.vmem %s1, %s343
    %345 = vst [vmem:[%s344] sm:%s342] %v341
    %s346 = scalar_lea.vmem [#allocation0], 176
    %v347 = vld [vmem:[%s346] sm:%s194]
    %v348 = vpack.c.bf16 0.0, %v347
    %s349 = sshllo.u32 0, %s195
    %s350 = smul.addr 1, 22
    %s351 = scalar_lea.vmem %s1, %s350
    %352 = vst [vmem:[%s351] sm:%s349] %v348
    %s353 = scalar_lea.vmem [#allocation0], 184
    %v354 = vld [vmem:[%s353] sm:%s194]
    %v355 = vpack.c.bf16 0.0, %v354
    %s356 = sshllo.u32 0, %s195
    %s357 = smul.addr 1, 23
    %s358 = scalar_lea.vmem %s1, %s357
    %359 = vst [vmem:[%s358] sm:%s356] %v355
    %s360 = scalar_lea.vmem [#allocation0], 192
    %v361 = vld [vmem:[%s360] sm:%s194]
    %v362 = vpack.c.bf16 0.0, %v361
    %s363 = sshllo.u32 0, %s195
    %s364 = smul.addr 1, 24
    %s365 = scalar_lea.vmem %s1, %s364
    %366 = vst [vmem:[%s365] sm:%s363] %v362
    %s367 = scalar_lea.vmem [#allocation0], 200
    %v368 = vld [vmem:[%s367] sm:%s194]
    %v369 = vpack.c.bf16 0.0, %v368
    %s370 = sshllo.u32 0, %s195
    %s371 = smul.addr 1, 25
    %s372 = scalar_lea.vmem %s1, %s371
    %373 = vst [vmem:[%s372] sm:%s370] %v369
    %s374 = scalar_lea.vmem [#allocation0], 208
    %v375 = vld [vmem:[%s374] sm:%s194]
    %v376 = vpack.c.bf16 0.0, %v375
    %s377 = sshllo.u32 0, %s195
    %s378 = smul.addr 1, 26
    %s379 = scalar_lea.vmem %s1, %s378
    %380 = vst [vmem:[%s379] sm:%s377] %v376
    %s381 = scalar_lea.vmem [#allocation0], 216
    %v382 = vld [vmem:[%s381] sm:%s194]
    %v383 = vpack.c.bf16 0.0, %v382
    %s384 = sshllo.u32 0, %s195
    %s385 = smul.addr 1, 27
    %s386 = scalar_lea.vmem %s1, %s385
    %387 = vst [vmem:[%s386] sm:%s384] %v383
    %s388 = scalar_lea.vmem [#allocation0], 224
    %v389 = vld [vmem:[%s388] sm:%s194]
    %v390 = vpack.c.bf16 0.0, %v389
    %s391 = sshllo.u32 0, %s195
    %s392 = smul.addr 1, 28
    %s393 = scalar_lea.vmem %s1, %s392
    %394 = vst [vmem:[%s393] sm:%s391] %v390
    %s395 = scalar_lea.vmem [#allocation0], 232
    %v396 = vld [vmem:[%s395] sm:%s194]
    %v397 = vpack.c.bf16 0.0, %v396
    %s398 = sshllo.u32 0, %s195
    %s399 = smul.addr 1, 29
    %s400 = scalar_lea.vmem %s1, %s399
    %401 = vst [vmem:[%s400] sm:%s398] %v397
    %s402 = scalar_lea.vmem [#allocation0], 240
    %v403 = vld [vmem:[%s402] sm:%s194]
    %v404 = vpack.c.bf16 0.0, %v403
    %s405 = sshllo.u32 0, %s195
    %s406 = smul.addr 1, 30
    %s407 = scalar_lea.vmem %s1, %s406
    %408 = vst [vmem:[%s407] sm:%s405] %v404
    %s409 = scalar_lea.vmem [#allocation0], 248
    %v410 = vld [vmem:[%s409] sm:%s194]
    %v411 = vpack.c.bf16 0.0, %v410
    %s412 = sshllo.u32 0, %s195
    %s413 = smul.addr 1, 31
    %s414 = scalar_lea.vmem %s1, %s413
    %415 = vst [vmem:[%s414] sm:%s412] %v411
    %s416 = scalar_lea.vmem [#allocation0], 256
    %v417 = vld [vmem:[%s416] sm:%s194]
    %v418 = vpack.c.bf16 0.0, %v417
    %s419 = sshllo.u32 0, %s195
    %s420 = smul.addr 1, 32
    %s421 = scalar_lea.vmem %s1, %s420
    %422 = vst [vmem:[%s421] sm:%s419] %v418
    %s423 = scalar_lea.vmem [#allocation0], 264
    %v424 = vld [vmem:[%s423] sm:%s194]
    %v425 = vpack.c.bf16 0.0, %v424
    %s426 = sshllo.u32 0, %s195
    %s427 = smul.addr 1, 33
    %s428 = scalar_lea.vmem %s1, %s427
    %429 = vst [vmem:[%s428] sm:%s426] %v425
    %s430 = scalar_lea.vmem [#allocation0], 272
    %v431 = vld [vmem:[%s430] sm:%s194]
    %v432 = vpack.c.bf16 0.0, %v431
    %s433 = sshllo.u32 0, %s195
    %s434 = smul.addr 1, 34
    %s435 = scalar_lea.vmem %s1, %s434
    %436 = vst [vmem:[%s435] sm:%s433] %v432
    %s437 = scalar_lea.vmem [#allocation0], 280
    %v438 = vld [vmem:[%s437] sm:%s194]
    %v439 = vpack.c.bf16 0.0, %v438
    %s440 = sshllo.u32 0, %s195
    %s441 = smul.addr 1, 35
    %s442 = scalar_lea.vmem %s1, %s441
    %443 = vst [vmem:[%s442] sm:%s440] %v439
    %s444 = scalar_lea.vmem [#allocation0], 288
    %v445 = vld [vmem:[%s444] sm:%s194]
    %v446 = vpack.c.bf16 0.0, %v445
    %s447 = sshllo.u32 0, %s195
    %s448 = smul.addr 1, 36
    %s449 = scalar_lea.vmem %s1, %s448
    %450 = vst [vmem:[%s449] sm:%s447] %v446
    %s451 = scalar_lea.vmem [#allocation0], 296
    %v452 = vld [vmem:[%s451] sm:%s194]
    %v453 = vpack.c.bf16 0.0, %v452
    %s454 = sshllo.u32 0, %s195
    %s455 = smul.addr 1, 37
    %s456 = scalar_lea.vmem %s1, %s455
    %457 = vst [vmem:[%s456] sm:%s454] %v453
    %s458 = scalar_lea.vmem [#allocation0], 304
    %v459 = vld [vmem:[%s458] sm:%s194]
    %v460 = vpack.c.bf16 0.0, %v459
    %s461 = sshllo.u32 0, %s195
    %s462 = smul.addr 1, 38
    %s463 = scalar_lea.vmem %s1, %s462
    %464 = vst [vmem:[%s463] sm:%s461] %v460
    %s465 = scalar_lea.vmem [#allocation0], 312
    %v466 = vld [vmem:[%s465] sm:%s194]
    %v467 = vpack.c.bf16 0.0, %v466
    %s468 = sshllo.u32 0, %s195
    %s469 = smul.addr 1, 39
    %s470 = scalar_lea.vmem %s1, %s469
    %471 = vst [vmem:[%s470] sm:%s468] %v467
    %s472 = scalar_lea.vmem [#allocation0], 320
    %v473 = vld [vmem:[%s472] sm:%s194]
    %v474 = vpack.c.bf16 0.0, %v473
    %s475 = sshllo.u32 0, %s195
    %s476 = smul.addr 1, 40
    %s477 = scalar_lea.vmem %s1, %s476
    %478 = vst [vmem:[%s477] sm:%s475] %v474
    %s479 = scalar_lea.vmem [#allocation0], 328
    %v480 = vld [vmem:[%s479] sm:%s194]
    %v481 = vpack.c.bf16 0.0, %v480
    %s482 = sshllo.u32 0, %s195
    %s483 = smul.addr 1, 41
    %s484 = scalar_lea.vmem %s1, %s483
    %485 = vst [vmem:[%s484] sm:%s482] %v481
    %s486 = scalar_lea.vmem [#allocation0], 336
    %v487 = vld [vmem:[%s486] sm:%s194]
    %v488 = vpack.c.bf16 0.0, %v487
    %s489 = sshllo.u32 0, %s195
    %s490 = smul.addr 1, 42
    %s491 = scalar_lea.vmem %s1, %s490
    %492 = vst [vmem:[%s491] sm:%s489] %v488
    %s493 = scalar_lea.vmem [#allocation0], 344
    %v494 = vld [vmem:[%s493] sm:%s194]
    %v495 = vpack.c.bf16 0.0, %v494
    %s496 = sshllo.u32 0, %s195
    %s497 = smul.addr 1, 43
    %s498 = scalar_lea.vmem %s1, %s497
    %499 = vst [vmem:[%s498] sm:%s496] %v495
    %s500 = scalar_lea.vmem [#allocation0], 352
    %v501 = vld [vmem:[%s500] sm:%s194]
    %v502 = vpack.c.bf16 0.0, %v501
    %s503 = sshllo.u32 0, %s195
    %s504 = smul.addr 1, 44
    %s505 = scalar_lea.vmem %s1, %s504
    %506 = vst [vmem:[%s505] sm:%s503] %v502
    %s507 = scalar_lea.vmem [#allocation0], 360
    %v508 = vld [vmem:[%s507] sm:%s194]
    %v509 = vpack.c.bf16 0.0, %v508
    %s510 = sshllo.u32 0, %s195
    %s511 = smul.addr 1, 45
    %s512 = scalar_lea.vmem %s1, %s511
    %513 = vst [vmem:[%s512] sm:%s510] %v509
    %s514 = scalar_lea.vmem [#allocation0], 368
    %v515 = vld [vmem:[%s514] sm:%s194]
    %v516 = vpack.c.bf16 0.0, %v515
    %s517 = sshllo.u32 0, %s195
    %s518 = smul.addr 1, 46
    %s519 = scalar_lea.vmem %s1, %s518
    %520 = vst [vmem:[%s519] sm:%s517] %v516
    %s521 = scalar_lea.vmem [#allocation0], 376
    %v522 = vld [vmem:[%s521] sm:%s194]
    %v523 = vpack.c.bf16 0.0, %v522
    %s524 = sshllo.u32 0, %s195
    %s525 = smul.addr 1, 47
    %s526 = scalar_lea.vmem %s1, %s525
    %527 = vst [vmem:[%s526] sm:%s524] %v523
    %s528 = scalar_lea.vmem [#allocation0], 384
    %v529 = vld [vmem:[%s528] sm:%s194]
    %v530 = vpack.c.bf16 0.0, %v529
    %s531 = sshllo.u32 0, %s195
    %s532 = smul.addr 1, 48
    %s533 = scalar_lea.vmem %s1, %s532
    %534 = vst [vmem:[%s533] sm:%s531] %v530
    %s535 = scalar_lea.vmem [#allocation0], 392
    %v536 = vld [vmem:[%s535] sm:%s194]
    %v537 = vpack.c.bf16 0.0, %v536
    %s538 = sshllo.u32 0, %s195
    %s539 = smul.addr 1, 49
    %s540 = scalar_lea.vmem %s1, %s539
    %541 = vst [vmem:[%s540] sm:%s538] %v537
    %s542 = scalar_lea.vmem [#allocation0], 400
    %v543 = vld [vmem:[%s542] sm:%s194]
    %v544 = vpack.c.bf16 0.0, %v543
    %s545 = sshllo.u32 0, %s195
    %s546 = smul.addr 1, 50
    %s547 = scalar_lea.vmem %s1, %s546
    %548 = vst [vmem:[%s547] sm:%s545] %v544
    %s549 = scalar_lea.vmem [#allocation0], 408
    %v550 = vld [vmem:[%s549] sm:%s194]
    %v551 = vpack.c.bf16 0.0, %v550
    %s552 = sshllo.u32 0, %s195
    %s553 = smul.addr 1, 51
    %s554 = scalar_lea.vmem %s1, %s553
    %555 = vst [vmem:[%s554] sm:%s552] %v551
    %s556 = scalar_lea.vmem [#allocation0], 416
    %v557 = vld [vmem:[%s556] sm:%s194]
    %v558 = vpack.c.bf16 0.0, %v557
    %s559 = sshllo.u32 0, %s195
    %s560 = smul.addr 1, 52
    %s561 = scalar_lea.vmem %s1, %s560
    %562 = vst [vmem:[%s561] sm:%s559] %v558
    %s563 = scalar_lea.vmem [#allocation0], 424
    %v564 = vld [vmem:[%s563] sm:%s194]
    %v565 = vpack.c.bf16 0.0, %v564
    %s566 = sshllo.u32 0, %s195
    %s567 = smul.addr 1, 53
    %s568 = scalar_lea.vmem %s1, %s567
    %569 = vst [vmem:[%s568] sm:%s566] %v565
    %s570 = scalar_lea.vmem [#allocation0], 432
    %v571 = vld [vmem:[%s570] sm:%s194]
    %v572 = vpack.c.bf16 0.0, %v571
    %s573 = sshllo.u32 0, %s195
    %s574 = smul.addr 1, 54
    %s575 = scalar_lea.vmem %s1, %s574
    %576 = vst [vmem:[%s575] sm:%s573] %v572
    %s577 = scalar_lea.vmem [#allocation0], 440
    %v578 = vld [vmem:[%s577] sm:%s194]
    %v579 = vpack.c.bf16 0.0, %v578
    %s580 = sshllo.u32 0, %s195
    %s581 = smul.addr 1, 55
    %s582 = scalar_lea.vmem %s1, %s581
    %583 = vst [vmem:[%s582] sm:%s580] %v579
    %s584 = scalar_lea.vmem [#allocation0], 448
    %v585 = vld [vmem:[%s584] sm:%s194]
    %v586 = vpack.c.bf16 0.0, %v585
    %s587 = sshllo.u32 0, %s195
    %s588 = smul.addr 1, 56
    %s589 = scalar_lea.vmem %s1, %s588
    %590 = vst [vmem:[%s589] sm:%s587] %v586
    %s591 = scalar_lea.vmem [#allocation0], 456
    %v592 = vld [vmem:[%s591] sm:%s194]
    %v593 = vpack.c.bf16 0.0, %v592
    %s594 = sshllo.u32 0, %s195
    %s595 = smul.addr 1, 57
    %s596 = scalar_lea.vmem %s1, %s595
    %597 = vst [vmem:[%s596] sm:%s594] %v593
    %s598 = scalar_lea.vmem [#allocation0], 464
    %v599 = vld [vmem:[%s598] sm:%s194]
    %v600 = vpack.c.bf16 0.0, %v599
    %s601 = sshllo.u32 0, %s195
    %s602 = smul.addr 1, 58
    %s603 = scalar_lea.vmem %s1, %s602
    %604 = vst [vmem:[%s603] sm:%s601] %v600
    %s605 = scalar_lea.vmem [#allocation0], 472
    %v606 = vld [vmem:[%s605] sm:%s194]
    %v607 = vpack.c.bf16 0.0, %v606
    %s608 = sshllo.u32 0, %s195
    %s609 = smul.addr 1, 59
    %s610 = scalar_lea.vmem %s1, %s609
    %611 = vst [vmem:[%s610] sm:%s608] %v607
    %s612 = scalar_lea.vmem [#allocation0], 480
    %v613 = vld [vmem:[%s612] sm:%s194]
    %v614 = vpack.c.bf16 0.0, %v613
    %s615 = sshllo.u32 0, %s195
    %s616 = smul.addr 1, 60
    %s617 = scalar_lea.vmem %s1, %s616
    %618 = vst [vmem:[%s617] sm:%s615] %v614
    %s619 = scalar_lea.vmem [#allocation0], 488
    %v620 = vld [vmem:[%s619] sm:%s194]
    %v621 = vpack.c.bf16 0.0, %v620
    %s622 = sshllo.u32 0, %s195
    %s623 = smul.addr 1, 61
    %s624 = scalar_lea.vmem %s1, %s623
    %625 = vst [vmem:[%s624] sm:%s622] %v621
    %s626 = scalar_lea.vmem [#allocation0], 496
    %v627 = vld [vmem:[%s626] sm:%s194]
    %v628 = vpack.c.bf16 0.0, %v627
    %s629 = sshllo.u32 0, %s195
    %s630 = smul.addr 1, 62
    %s631 = scalar_lea.vmem %s1, %s630
    %632 = vst [vmem:[%s631] sm:%s629] %v628
    %s633 = scalar_lea.vmem [#allocation0], 504
    %v634 = vld [vmem:[%s633] sm:%s194]
    %v635 = vpack.c.bf16 0.0, %v634
    %s636 = sshllo.u32 0, %s195
    %s637 = smul.addr 1, 63
    %s638 = scalar_lea.vmem %s1, %s637
    %639 = vst [vmem:[%s638] sm:%s636] %v635
    %s640 = scalar_lea.vmem [#allocation0], 512
    %v641 = vld [vmem:[%s640] sm:%s194]
    %v642 = vpack.c.bf16 0.0, %v641
    %s643 = sshllo.u32 0, %s195
    %s644 = smul.addr 1, 64
    %s645 = scalar_lea.vmem %s1, %s644
    %646 = vst [vmem:[%s645] sm:%s643] %v642
    %s647 = scalar_lea.vmem [#allocation0], 520
    %v648 = vld [vmem:[%s647] sm:%s194]
    %v649 = vpack.c.bf16 0.0, %v648
    %s650 = sshllo.u32 0, %s195
    %s651 = smul.addr 1, 65
    %s652 = scalar_lea.vmem %s1, %s651
    %653 = vst [vmem:[%s652] sm:%s650] %v649
    %s654 = scalar_lea.vmem [#allocation0], 528
    %v655 = vld [vmem:[%s654] sm:%s194]
    %v656 = vpack.c.bf16 0.0, %v655
    %s657 = sshllo.u32 0, %s195
    %s658 = smul.addr 1, 66
    %s659 = scalar_lea.vmem %s1, %s658
    %660 = vst [vmem:[%s659] sm:%s657] %v656
    %s661 = scalar_lea.vmem [#allocation0], 536
    %v662 = vld [vmem:[%s661] sm:%s194]
    %v663 = vpack.c.bf16 0.0, %v662
    %s664 = sshllo.u32 0, %s195
    %s665 = smul.addr 1, 67
    %s666 = scalar_lea.vmem %s1, %s665
    %667 = vst [vmem:[%s666] sm:%s664] %v663
    %s668 = scalar_lea.vmem [#allocation0], 544
    %v669 = vld [vmem:[%s668] sm:%s194]
    %v670 = vpack.c.bf16 0.0, %v669
    %s671 = sshllo.u32 0, %s195
    %s672 = smul.addr 1, 68
    %s673 = scalar_lea.vmem %s1, %s672
    %674 = vst [vmem:[%s673] sm:%s671] %v670
    %s675 = scalar_lea.vmem [#allocation0], 552
    %v676 = vld [vmem:[%s675] sm:%s194]
    %v677 = vpack.c.bf16 0.0, %v676
    %s678 = sshllo.u32 0, %s195
    %s679 = smul.addr 1, 69
    %s680 = scalar_lea.vmem %s1, %s679
    %681 = vst [vmem:[%s680] sm:%s678] %v677
    %s682 = scalar_lea.vmem [#allocation0], 560
    %v683 = vld [vmem:[%s682] sm:%s194]
    %v684 = vpack.c.bf16 0.0, %v683
    %s685 = sshllo.u32 0, %s195
    %s686 = smul.addr 1, 70
    %s687 = scalar_lea.vmem %s1, %s686
    %688 = vst [vmem:[%s687] sm:%s685] %v684
    %s689 = scalar_lea.vmem [#allocation0], 568
    %v690 = vld [vmem:[%s689] sm:%s194]
    %v691 = vpack.c.bf16 0.0, %v690
    %s692 = sshllo.u32 0, %s195
    %s693 = smul.addr 1, 71
    %s694 = scalar_lea.vmem %s1, %s693
    %695 = vst [vmem:[%s694] sm:%s692] %v691
    %s696 = scalar_lea.vmem [#allocation0], 576
    %v697 = vld [vmem:[%s696] sm:%s194]
    %v698 = vpack.c.bf16 0.0, %v697
    %s699 = sshllo.u32 0, %s195
    %s700 = smul.addr 1, 72
    %s701 = scalar_lea.vmem %s1, %s700
    %702 = vst [vmem:[%s701] sm:%s699] %v698
    %s703 = scalar_lea.vmem [#allocation0], 584
    %v704 = vld [vmem:[%s703] sm:%s194]
    %v705 = vpack.c.bf16 0.0, %v704
    %s706 = sshllo.u32 0, %s195
    %s707 = smul.addr 1, 73
    %s708 = scalar_lea.vmem %s1, %s707
    %709 = vst [vmem:[%s708] sm:%s706] %v705
    %s710 = scalar_lea.vmem [#allocation0], 592
    %v711 = vld [vmem:[%s710] sm:%s194]
    %v712 = vpack.c.bf16 0.0, %v711
    %s713 = sshllo.u32 0, %s195
    %s714 = smul.addr 1, 74
    %s715 = scalar_lea.vmem %s1, %s714
    %716 = vst [vmem:[%s715] sm:%s713] %v712
    %s717 = scalar_lea.vmem [#allocation0], 600
    %v718 = vld [vmem:[%s717] sm:%s194]
    %v719 = vpack.c.bf16 0.0, %v718
    %s720 = sshllo.u32 0, %s195
    %s721 = smul.addr 1, 75
    %s722 = scalar_lea.vmem %s1, %s721
    %723 = vst [vmem:[%s722] sm:%s720] %v719
    %s724 = scalar_lea.vmem [#allocation0], 608
    %v725 = vld [vmem:[%s724] sm:%s194]
    %v726 = vpack.c.bf16 0.0, %v725
    %s727 = sshllo.u32 0, %s195
    %s728 = smul.addr 1, 76
    %s729 = scalar_lea.vmem %s1, %s728
    %730 = vst [vmem:[%s729] sm:%s727] %v726
    %s731 = scalar_lea.vmem [#allocation0], 616
    %v732 = vld [vmem:[%s731] sm:%s194]
    %v733 = vpack.c.bf16 0.0, %v732
    %s734 = sshllo.u32 0, %s195
    %s735 = smul.addr 1, 77
    %s736 = scalar_lea.vmem %s1, %s735
    %737 = vst [vmem:[%s736] sm:%s734] %v733
    %s738 = scalar_lea.vmem [#allocation0], 624
    %v739 = vld [vmem:[%s738] sm:%s194]
    %v740 = vpack.c.bf16 0.0, %v739
    %s741 = sshllo.u32 0, %s195
    %s742 = smul.addr 1, 78
    %s743 = scalar_lea.vmem %s1, %s742
    %744 = vst [vmem:[%s743] sm:%s741] %v740
    %s745 = scalar_lea.vmem [#allocation0], 632
    %v746 = vld [vmem:[%s745] sm:%s194]
    %v747 = vpack.c.bf16 0.0, %v746
    %s748 = sshllo.u32 0, %s195
    %s749 = smul.addr 1, 79
    %s750 = scalar_lea.vmem %s1, %s749
    %751 = vst [vmem:[%s750] sm:%s748] %v747
    %s752 = scalar_lea.vmem [#allocation0], 640
    %v753 = vld [vmem:[%s752] sm:%s194]
    %v754 = vpack.c.bf16 0.0, %v753
    %s755 = sshllo.u32 0, %s195
    %s756 = smul.addr 1, 80
    %s757 = scalar_lea.vmem %s1, %s756
    %758 = vst [vmem:[%s757] sm:%s755] %v754
    %s759 = scalar_lea.vmem [#allocation0], 648
    %v760 = vld [vmem:[%s759] sm:%s194]
    %v761 = vpack.c.bf16 0.0, %v760
    %s762 = sshllo.u32 0, %s195
    %s763 = smul.addr 1, 81
    %s764 = scalar_lea.vmem %s1, %s763
    %765 = vst [vmem:[%s764] sm:%s762] %v761
    %s766 = scalar_lea.vmem [#allocation0], 656
    %v767 = vld [vmem:[%s766] sm:%s194]
    %v768 = vpack.c.bf16 0.0, %v767
    %s769 = sshllo.u32 0, %s195
    %s770 = smul.addr 1, 82
    %s771 = scalar_lea.vmem %s1, %s770
    %772 = vst [vmem:[%s771] sm:%s769] %v768
    %s773 = scalar_lea.vmem [#allocation0], 664
    %v774 = vld [vmem:[%s773] sm:%s194]
    %v775 = vpack.c.bf16 0.0, %v774
    %s776 = sshllo.u32 0, %s195
    %s777 = smul.addr 1, 83
    %s778 = scalar_lea.vmem %s1, %s777
    %779 = vst [vmem:[%s778] sm:%s776] %v775
    %s780 = scalar_lea.vmem [#allocation0], 672
    %v781 = vld [vmem:[%s780] sm:%s194]
    %v782 = vpack.c.bf16 0.0, %v781
    %s783 = sshllo.u32 0, %s195
    %s784 = smul.addr 1, 84
    %s785 = scalar_lea.vmem %s1, %s784
    %786 = vst [vmem:[%s785] sm:%s783] %v782
    %s787 = scalar_lea.vmem [#allocation0], 680
    %v788 = vld [vmem:[%s787] sm:%s194]
    %v789 = vpack.c.bf16 0.0, %v788
    %s790 = sshllo.u32 0, %s195
    %s791 = smul.addr 1, 85
    %s792 = scalar_lea.vmem %s1, %s791
    %793 = vst [vmem:[%s792] sm:%s790] %v789
    %s794 = scalar_lea.vmem [#allocation0], 688
    %v795 = vld [vmem:[%s794] sm:%s194]
    %v796 = vpack.c.bf16 0.0, %v795
    %s797 = sshllo.u32 0, %s195
    %s798 = smul.addr 1, 86
    %s799 = scalar_lea.vmem %s1, %s798
    %800 = vst [vmem:[%s799] sm:%s797] %v796
    %s801 = scalar_lea.vmem [#allocation0], 696
    %v802 = vld [vmem:[%s801] sm:%s194]
    %v803 = vpack.c.bf16 0.0, %v802
    %s804 = sshllo.u32 0, %s195
    %s805 = smul.addr 1, 87
    %s806 = scalar_lea.vmem %s1, %s805
    %807 = vst [vmem:[%s806] sm:%s804] %v803
    %s808 = scalar_lea.vmem [#allocation0], 704
    %v809 = vld [vmem:[%s808] sm:%s194]
    %v810 = vpack.c.bf16 0.0, %v809
    %s811 = sshllo.u32 0, %s195
    %s812 = smul.addr 1, 88
    %s813 = scalar_lea.vmem %s1, %s812
    %814 = vst [vmem:[%s813] sm:%s811] %v810
    %s815 = scalar_lea.vmem [#allocation0], 712
    %v816 = vld [vmem:[%s815] sm:%s194]
    %v817 = vpack.c.bf16 0.0, %v816
    %s818 = sshllo.u32 0, %s195
    %s819 = smul.addr 1, 89
    %s820 = scalar_lea.vmem %s1, %s819
    %821 = vst [vmem:[%s820] sm:%s818] %v817
    %s822 = scalar_lea.vmem [#allocation0], 720
    %v823 = vld [vmem:[%s822] sm:%s194]
    %v824 = vpack.c.bf16 0.0, %v823
    %s825 = sshllo.u32 0, %s195
    %s826 = smul.addr 1, 90
    %s827 = scalar_lea.vmem %s1, %s826
    %828 = vst [vmem:[%s827] sm:%s825] %v824
    %s829 = scalar_lea.vmem [#allocation0], 728
    %v830 = vld [vmem:[%s829] sm:%s194]
    %v831 = vpack.c.bf16 0.0, %v830
    %s832 = sshllo.u32 0, %s195
    %s833 = smul.addr 1, 91
    %s834 = scalar_lea.vmem %s1, %s833
    %835 = vst [vmem:[%s834] sm:%s832] %v831
    %s836 = scalar_lea.vmem [#allocation0], 736
    %v837 = vld [vmem:[%s836] sm:%s194]
    %v838 = vpack.c.bf16 0.0, %v837
    %s839 = sshllo.u32 0, %s195
    %s840 = smul.addr 1, 92
    %s841 = scalar_lea.vmem %s1, %s840
    %842 = vst [vmem:[%s841] sm:%s839] %v838
    %s843 = scalar_lea.vmem [#allocation0], 744
    %v844 = vld [vmem:[%s843] sm:%s194]
    %v845 = vpack.c.bf16 0.0, %v844
    %s846 = sshllo.u32 0, %s195
    %s847 = smul.addr 1, 93
    %s848 = scalar_lea.vmem %s1, %s847
    %849 = vst [vmem:[%s848] sm:%s846] %v845
    %s850 = scalar_lea.vmem [#allocation0], 752
    %v851 = vld [vmem:[%s850] sm:%s194]
    %v852 = vpack.c.bf16 0.0, %v851
    %s853 = sshllo.u32 0, %s195
    %s854 = smul.addr 1, 94
    %s855 = scalar_lea.vmem %s1, %s854
    %856 = vst [vmem:[%s855] sm:%s853] %v852
    %s857 = scalar_lea.vmem [#allocation0], 760
    %v858 = vld [vmem:[%s857] sm:%s194]
    %v859 = vpack.c.bf16 0.0, %v858
    %s860 = sshllo.u32 0, %s195
    %s861 = smul.addr 1, 95
    %s862 = scalar_lea.vmem %s1, %s861
    %863 = vst [vmem:[%s862] sm:%s860] %v859

// kernel: squeeze.23
$region0: #{squeeze.23}
  %s0 = inlined_call_operand.vmem [shape: f32[96], index: 0, kind: input, shape index: {}]
  %s1 = inlined_call_operand.vmem [shape: f32[3,1,32], index: 1, kind: output, shape index: {}]
  $region1: #{squeeze.23} parent=0
    #allocation0 [shape = 'u8[4096]{0}', space=vmem, size = 0x1000, scoped, tag = 'scoped mem for output reshape']
    #allocation1 [shape = 'u8[4096]{0}', space=vmem, size = 0x1000, scoped, tag = 'scoped mem for input reshape']
    %s3 = sshllo.u32 0, 1
    %v4 = vld [vmem:[%s0] sm:%s3]
    %5 = vst [vmem:[#allocation1] sm:%s3] %v4
    %v6 = vld [vmem:[#allocation1] sm:$0x1]
    %vm7 = vcmask 261120
    %8 = vst.msk [vmem:[#allocation0] sm:$0x1] %vm7, %v6
    %v9 = vld [vmem:[#allocation1] sm:$0x1]
    %10 = vrot.lane.b32.xlu0 %v9, 96
    %v11 = vpop.permute.xlu0 %10
    %vm12 = vcmask 261120
    %s13 = scalar_lea.vmem [#allocation0], 1
    %14 = vst.msk [vmem:[%s13] sm:$0x1] %vm12, %v11
    %v15 = vld [vmem:[#allocation1] sm:$0x1]
    %16 = vrot.lane.b32.xlu0 %v15, 64
    %v17 = vpop.permute.xlu0 %16
    %vm18 = vcmask 261120
    %s19 = scalar_lea.vmem [#allocation0], 2
    %20 = vst.msk [vmem:[%s19] sm:$0x1] %vm18, %v17
    %s22 = sshllo.u32 0, 4
    %v24 = vld [vmem:[#allocation0] sm:%s22]
    %s25 = sshllo.u32 0, 4
    %26 = vst [vmem:[%s1] sm:%s25] %v24

// kernel: cell_forward_pallas.1
$region0: #{cell_forward_pallas.1}
  #allocation0 [shape = 'u32[]', space=smem, size = 0x4, offset = 0x4, fixed_abs, tag = 'smem constant byte address 0x4 - core index']
  #allocation1 [shape = 'u32[144,128]{1,0:T(1,128)}', space=vmem, size = 0x12000, scoped, tag = 'internal scratch']
  %s0 = inlined_call_operand.vmem [shape: f32[8,32], index: 0, kind: input, shape index: {}]
  %s1 = inlined_call_operand.vmem [shape: bf16[2,32,96], index: 1, kind: input, shape index: {}]
  %s2 = inlined_call_operand.vmem [shape: f32[2,1,96], index: 2, kind: input, shape index: {}]
  %s3 = inlined_call_operand.vmem [shape: bf16[3,64,192], index: 3, kind: input, shape index: {}]
  %s4 = inlined_call_operand.vmem [shape: f32[3,1,192], index: 4, kind: input, shape index: {}]
  %s5 = inlined_call_operand.vmem [shape: bf16[96,32], index: 5, kind: input, shape index: {}]
  %s6 = inlined_call_operand.vmem [shape: f32[1,32], index: 6, kind: input, shape index: {}]
  %s7 = inlined_call_operand.hbm [shape: f32[8,32], index: 7, kind: output, shape index: {}]
  %s8 = sld [smem:[#allocation0]]
  $region38: #{cell_forward_pallas.1} parent=0
    _
  %s10 = ssub.s32 1, %s8
  %s11 = scalar_select 0, %s10, %s8
  $region1: #{cell_forward_pallas.1} parent=0
    #allocation2 [shape = 'u8[4096]{0}', space=vmem, size = 0x1000, scoped, tag = 'output window, operand 0, single buffered']
    #allocation3 [shape = 's32[1]{0}', space=sflag, size = 0x4, scoped, tag = 'scoped memory for cell_forward_pallas.1']
    %12 = vsyncpa [#allocation3], 0
    // Predicated region
    $region2: #{cell_forward_pallas.1} parent=1 // pred_check
      _
    $region3: #{cell_forward_pallas.1} parent=1 // pred_check_branch
      %14 = sbr.rel (0) target = $region5
    $region4: #{cell_forward_pallas.1} parent=1 // pred_region
      _
    $region5: #{cell_forward_pallas.1} parent=1 // pred_fallthru
      _
    // Predicated region
    $region6: #{cell_forward_pallas.1} parent=1 // pred_check
      _
    $region7: #{cell_forward_pallas.1} parent=1 // pred_check_branch
      %16 = sbr.rel (0) target = $region9
    $region8: #{cell_forward_pallas.1} parent=1 // pred_region
      _
    $region9: #{cell_forward_pallas.1} parent=1 // pred_fallthru
      _
    // Predicated region
    $region10: #{cell_forward_pallas.1} parent=1 // pred_check
      _
    $region11: #{cell_forward_pallas.1} parent=1 // pred_check_branch
      %18 = sbr.rel (0) target = $region13
    $region12: #{cell_forward_pallas.1} parent=1 // pred_region
      _
    $region13: #{cell_forward_pallas.1} parent=1 // pred_fallthru
      _
    // Predicated region
    $region14: #{cell_forward_pallas.1} parent=1 // pred_check
      _
    $region15: #{cell_forward_pallas.1} parent=1 // pred_check_branch
      %20 = sbr.rel (0) target = $region17
    $region16: #{cell_forward_pallas.1} parent=1 // pred_region
      _
    $region17: #{cell_forward_pallas.1} parent=1 // pred_fallthru
      _
    // Predicated region
    $region18: #{cell_forward_pallas.1} parent=1 // pred_check
      _
    $region19: #{cell_forward_pallas.1} parent=1 // pred_check_branch
      %22 = sbr.rel (0) target = $region21
    $region20: #{cell_forward_pallas.1} parent=1 // pred_region
      _
    $region21: #{cell_forward_pallas.1} parent=1 // pred_fallthru
      _
    // Predicated region
    $region22: #{cell_forward_pallas.1} parent=1 // pred_check
      _
    $region23: #{cell_forward_pallas.1} parent=1 // pred_check_branch
      %24 = sbr.rel (0) target = $region25
    $region24: #{cell_forward_pallas.1} parent=1 // pred_region
      _
    $region25: #{cell_forward_pallas.1} parent=1 // pred_fallthru
      _
    // Predicated region
    $region26: #{cell_forward_pallas.1} parent=1 // pred_check
      _
    $region27: #{cell_forward_pallas.1} parent=1 // pred_check_branch
      %26 = sbr.rel (0) target = $region29
    $region28: #{cell_forward_pallas.1} parent=1 // pred_region
      _
    $region29: #{cell_forward_pallas.1} parent=1 // pred_fallthru
      _
    %v28 = vld [vmem:[%s0] sm:$0xff]
    %v29 = vpack.c.bf16 %v28, %v28
    %v30 = vld [vmem:[%s1] sm:$0xf]
    %v31 = vld [vmem:[%s1 + $0x4] sm:$0xf]
    %v32 = vld [vmem:[%s1 + $0x8] sm:$0xf]
    %v33 = vld [vmem:[%s1 + $0xc] sm:$0xf]
    %v34 = vld [vmem:[%s2] sm:$0x1]
    %v36 = vlaneseq
    %v37 = vshrl.u32 %v36, 7
    %v38 = vsub.s32 0, %v37
    %v39 = vrot.slane %v34, %v38
    %v45 = vunpack.c.l.b16 %v30
    %v46 = vunpack.c.l.b16 %v31
    %v47 = vunpack.c.l.b16 %v32
    %v48 = vunpack.c.l.b16 %v33
    %v49 = vpack.c.b16 %v46, %v45
    %v50 = vpack.c.b16 %v48, %v47
    %vm53 = vcmask 261120
    %v55 = vsel %vm53, %v29, 0
    %57 = vmatprep.subr.bf16.mxu0 0
    %58 = vmatpush1.bf16.msra.mxu0 %v49
    %59 = vmatprep.subr.bf16.mxu0 0
    %60 = vmatpush1.bf16.msra.mxu0 %v50
    %61 = vmatprep.subr.bf16.mxu0 0
    %62 = vmatpush1.bf16.msra.mxu0 0
    %63 = vmatprep.subr.bf16.mxu0 0
    %64 = vmatpush1.bf16.msra.mxu0 0
    %65 = vmatprep.subr.bf16.mxu0 0
    %66 = vmatpush1.bf16.msra.mxu0 0
    %67 = vmatprep.subr.bf16.mxu0 0
    %68 = vmatpush1.bf16.msra.mxu0 0
    %69 = vmatprep.subr.bf16.mxu0 0
    %70 = vmatpush1.bf16.msra.mxu0 0
    %71 = vmatprep.subr.bf16.mxu0 0
    %72 = vmatpush1.bf16.msra.mxu0 0
    %73 = vmatprep.subr.bf16.mxu0 0
    %74 = vmatpush1.bf16.msra.mxu0 0
    %75 = vmatprep.subr.bf16.mxu0 0
    %76 = vmatpush1.bf16.msra.mxu0 0
    %77 = vmatprep.subr.bf16.mxu0 0
    %78 = vmatpush1.bf16.msra.mxu0 0
    %79 = vmatprep.subr.bf16.mxu0 0
    %80 = vmatpush1.bf16.msra.mxu0 0
    %81 = vmatprep.subr.bf16.mxu0 0
    %82 = vmatpush1.bf16.msra.mxu0 0
    %83 = vmatprep.subr.bf16.mxu0 0
    %84 = vmatpush1.bf16.msra.mxu0 0
    %85 = vmatprep.subr.bf16.mxu0 0
    %86 = vmatpush1.bf16.msra.mxu0 0
    %87 = vmatprep.subr.bf16.mxu0 0
    %88 = vmatpush1.bf16.msra.mxu0 0
    %89 = vmatprep.mubr.bf16.mxu0 0
    %90 = vmatmul.mubr.bf16.gmra.mrb[0].mxu0 %v55
    %v91 = vpop.f32.mrb[0].mxu0
    %v92 = vadd.f32 %v39, %v91
    %v93 = vpop.f32.mrb[0].mxu0
    %v94 = vpop.f32.mrb[0].mxu0
    %v95 = vpop.f32.mrb[0].mxu0
    %96 = vdwg.mxu0
    %v97 = vmax.f32 %v92, 0.0
    %99 = vrot.lane.b32.xlu0 %v97, 96
    %v100 = vpop.permute.xlu0 %99
    %v102 = vadd.f32 %v97, %v100
    %103 = vrot.lane.b32.xlu0 %v97, 64
    %v104 = vpop.permute.xlu0 %103
    %v106 = vadd.f32 %v102, %v104
    %v107 = vpack.c.bf16 %v106, %v106
    %s108 = scalar_lea.vmem %s1, 16
    %v109 = vld [vmem:[%s108] sm:$0xf]
    %v110 = vld [vmem:[%s108 + $0x4] sm:$0xf]
    %v111 = vld [vmem:[%s108 + $0x8] sm:$0xf]
    %v112 = vld [vmem:[%s108 + $0xc] sm:$0xf]
    %s113 = scalar_lea.vmem %s2, 1
    %v114 = vld [vmem:[%s113] sm:$0x1]
    %v116 = vlaneseq
    %v117 = vshrl.u32 %v116, 7
    %v118 = vsub.s32 0, %v117
    %v119 = vrot.slane %v114, %v118
    %v125 = vunpack.c.l.b16 %v109
    %v126 = vunpack.c.l.b16 %v110
    %v127 = vunpack.c.l.b16 %v111
    %v128 = vunpack.c.l.b16 %v112
    %v129 = vpack.c.b16 %v126, %v125
    %v130 = vpack.c.b16 %v128, %v127
    %v134 = vsel %vm53, %v107, 0
    %136 = vmatprep.subr.bf16.mxu0 0
    %137 = vmatpush1.bf16.msra.mxu0 %v129
    %138 = vmatprep.subr.bf16.mxu0 0
    %139 = vmatpush1.bf16.msra.mxu0 %v130
    %140 = vmatprep.subr.bf16.mxu0 0
    %141 = vmatpush1.bf16.msra.mxu0 0
    %142 = vmatprep.subr.bf16.mxu0 0
    %143 = vmatpush1.bf16.msra.mxu0 0
    %144 = vmatprep.subr.bf16.mxu0 0
    %145 = vmatpush1.bf16.msra.mxu0 0
    %146 = vmatprep.subr.bf16.mxu0 0
    %147 = vmatpush1.bf16.msra.mxu0 0
    %148 = vmatprep.subr.bf16.mxu0 0
    %149 = vmatpush1.bf16.msra.mxu0 0
    %150 = vmatprep.subr.bf16.mxu0 0
    %151 = vmatpush1.bf16.msra.mxu0 0
    %152 = vmatprep.subr.bf16.mxu0 0
    %153 = vmatpush1.bf16.msra.mxu0 0
    %154 = vmatprep.subr.bf16.mxu0 0
    %155 = vmatpush1.bf16.msra.mxu0 0
    %156 = vmatprep.subr.bf16.mxu0 0
    %157 = vmatpush1.bf16.msra.mxu0 0
    %158 = vmatprep.subr.bf16.mxu0 0
    %159 = vmatpush1.bf16.msra.mxu0 0
    %160 = vmatprep.subr.bf16.mxu0 0
    %161 = vmatpush1.bf16.msra.mxu0 0
    %162 = vmatprep.subr.bf16.mxu0 0
    %163 = vmatpush1.bf16.msra.mxu0 0
    %164 = vmatprep.subr.bf16.mxu0 0
    %165 = vmatpush1.bf16.msra.mxu0 0
    %166 = vmatprep.subr.bf16.mxu0 0
    %167 = vmatpush1.bf16.msra.mxu0 0
    %168 = vmatprep.mubr.bf16.mxu0 0
    %169 = vmatmul.mubr.bf16.gmra.mrb[0].mxu0 %v134
    %v170 = vpop.f32.mrb[0].mxu0
    %v171 = vadd.f32 %v119, %v170
    %v172 = vpop.f32.mrb[0].mxu0
    %v173 = vpop.f32.mrb[0].mxu0
    %v174 = vpop.f32.mrb[0].mxu0
    %175 = vdwg.mxu0
    %v176 = vmax.f32 %v171, 0.0
    %178 = vrot.lane.b32.xlu0 %v176, 96
    %v179 = vpop.permute.xlu0 %178
    %v181 = vadd.f32 %v176, %v179
    %182 = vrot.lane.b32.xlu0 %v176, 64
    %v183 = vpop.permute.xlu0 %182
    %v185 = vadd.f32 %v181, %v183
    %187 = vrot.lane.b32.xlu0 %v185, 32
    %v188 = vpop.permute.xlu0 %187
    %v190 = vsel %vm53, %v106, %v188
    %v191 = vpack.c.bf16 %v190, %v190
    %v192 = vld [vmem:[%s3] sm:$0xff]
    %v193 = vld [vmem:[%s3 + $0x8] sm:$0xff]
    %v194 = vld [vmem:[%s3 + $0x10] sm:$0xff]
    %v195 = vld [vmem:[%s3 + $0x18] sm:$0xff]
    %v196 = vld [vmem:[%s3 + $0x20] sm:$0xff]
    %v197 = vld [vmem:[%s3 + $0x28] sm:$0xff]
    %v198 = vld [vmem:[%s3 + $0x30] sm:$0xff]
    %v199 = vld [vmem:[%s3 + $0x38] sm:$0xff]
    %v200 = vld [vmem:[%s4] sm:$0x3]
    %v202 = vlaneseq
    %v203 = vshrl.u32 %v202, 7
    %v204 = vsub.s32 0, %v203
    %v205 = vrot.slane %v200, %v204
    %v206 = vlaneseq
    %v207 = vshrl.u32 %v206, 7
    %v208 = vsub.s32 1, %v207
    %v209 = vrot.slane %v200, %v208
    %v220 = vunpack.c.l.b16 %v192
    %v221 = vunpack.c.h.b16 %v192
    %v222 = vunpack.c.l.b16 %v193
    %v223 = vunpack.c.h.b16 %v193
    %v224 = vunpack.c.l.b16 %v194
    %v225 = vunpack.c.h.b16 %v194
    %v226 = vunpack.c.l.b16 %v195
    %v227 = vunpack.c.h.b16 %v195
    %v228 = vunpack.c.l.b16 %v196
    %v229 = vunpack.c.h.b16 %v196
    %v230 = vunpack.c.l.b16 %v197
    %v231 = vunpack.c.h.b16 %v197
    %v232 = vunpack.c.l.b16 %v198
    %v233 = vunpack.c.h.b16 %v198
    %v234 = vunpack.c.l.b16 %v199
    %v235 = vunpack.c.h.b16 %v199
    %v236 = vpack.c.b16 %v222, %v220
    %v237 = vpack.c.b16 %v223, %v221
    %v238 = vpack.c.b16 %v226, %v224
    %v239 = vpack.c.b16 %v227, %v225
    %v240 = vpack.c.b16 %v230, %v228
    %v241 = vpack.c.b16 %v231, %v229
    %v242 = vpack.c.b16 %v234, %v232
    %v243 = vpack.c.b16 %v235, %v233
    %vm252 = vcmask 523264
    %v254 = vsel %vm252, %v191, 0
    %256 = vmatprep.subr.bf16.mxu0 %v237
    %257 = vmatpush1.bf16.msra.mxu0 %v236
    %258 = vmatprep.subr.bf16.mxu0 %v239
    %259 = vmatpush1.bf16.msra.mxu0 %v238
    %260 = vmatprep.subr.bf16.mxu0 %v241
    %261 = vmatpush1.bf16.msra.mxu0 %v240
    %262 = vmatprep.subr.bf16.mxu0 %v243
    %263 = vmatpush1.bf16.msra.mxu0 %v242
    %264 = vmatprep.subr.bf16.mxu0 0
    %265 = vmatpush1.bf16.msra.mxu0 0
    %266 = vmatprep.subr.bf16.mxu0 0
    %267 = vmatpush1.bf16.msra.mxu0 0
    %268 = vmatprep.subr.bf16.mxu0 0
    %269 = vmatpush1.bf16.msra.mxu0 0
    %270 = vmatprep.subr.bf16.mxu0 0
    %271 = vmatpush1.bf16.msra.mxu0 0
    %272 = vmatprep.subr.bf16.mxu0 0
    %273 = vmatpush1.bf16.msra.mxu0 0
    %274 = vmatprep.subr.bf16.mxu0 0
    %275 = vmatpush1.bf16.msra.mxu0 0
    %276 = vmatprep.subr.bf16.mxu0 0
    %277 = vmatpush1.bf16.msra.mxu0 0
    %278 = vmatprep.subr.bf16.mxu0 0
    %279 = vmatpush1.bf16.msra.mxu0 0
    %280 = vmatprep.subr.bf16.mxu0 0
    %281 = vmatpush1.bf16.msra.mxu0 0
    %282 = vmatprep.subr.bf16.mxu0 0
    %283 = vmatpush1.bf16.msra.mxu0 0
    %284 = vmatprep.subr.bf16.mxu0 0
    %285 = vmatpush1.bf16.msra.mxu0 0
    %286 = vmatprep.subr.bf16.mxu0 0
    %287 = vmatpush1.bf16.msra.mxu0 0
    %288 = vmatprep.mubr.bf16.mxu0 0
    %289 = vmatmul.mubr.bf16.gmra.mrb[0].mxu0 %v254
    %v290 = vpop.f32.mrb[0].mxu0
    %v291 = vadd.f32 %v205, %v290
    %v292 = vpop.f32.mrb[0].mxu0
    %v293 = vadd.f32 %v209, %v292
    %v294 = vpop.f32.mrb[0].mxu0
    %v295 = vpop.f32.mrb[0].mxu0
    %296 = vdwg.mxu0
    %v297 = vmax.f32 %v291, 0.0
    %v298 = vmax.f32 %v293, 0.0
    %300 = vrot.lane.b32.xlu0 %v297, 64
    %v301 = vpop.permute.xlu0 %300
    %v303 = vadd.f32 %v297, %v301
    %v304 = vadd.f32 %v303, %v298
    %306 = vrot.lane.b32.xlu0 %v304, 96
    %v307 = vpop.permute.xlu0 %306
    %v309 = vadd.f32 %v304, %v307
    %311 = vrot.lane.b32.xlu0 %v309, 32
    %v312 = vpop.permute.xlu0 %311
    %v314 = vsel %vm53, %v185, %v312
    %v315 = vpack.c.bf16 %v314, %v314
    %s316 = scalar_lea.vmem %s3, 64
    %v317 = vld [vmem:[%s316] sm:$0xff]
    %v318 = vld [vmem:[%s316 + $0x8] sm:$0xff]
    %v319 = vld [vmem:[%s316 + $0x10] sm:$0xff]
    %v320 = vld [vmem:[%s316 + $0x18] sm:$0xff]
    %v321 = vld [vmem:[%s316 + $0x20] sm:$0xff]
    %v322 = vld [vmem:[%s316 + $0x28] sm:$0xff]
    %v323 = vld [vmem:[%s316 + $0x30] sm:$0xff]
    %v324 = vld [vmem:[%s316 + $0x38] sm:$0xff]
    %s325 = scalar_lea.vmem %s4, 2
    %v326 = vld [vmem:[%s325] sm:$0x3]
    %v328 = vlaneseq
    %v329 = vshrl.u32 %v328, 7
    %v330 = vsub.s32 0, %v329
    %v331 = vrot.slane %v326, %v330
    %v332 = vlaneseq
    %v333 = vshrl.u32 %v332, 7
    %v334 = vsub.s32 1, %v333
    %v335 = vrot.slane %v326, %v334
    %v346 = vunpack.c.l.b16 %v317
    %v347 = vunpack.c.h.b16 %v317
    %v348 = vunpack.c.l.b16 %v318
    %v349 = vunpack.c.h.b16 %v318
    %v350 = vunpack.c.l.b16 %v319
    %v351 = vunpack.c.h.b16 %v319
    %v352 = vunpack.c.l.b16 %v320
    %v353 = vunpack.c.h.b16 %v320
    %v354 = vunpack.c.l.b16 %v321
    %v355 = vunpack.c.h.b16 %v321
    %v356 = vunpack.c.l.b16 %v322
    %v357 = vunpack.c.h.b16 %v322
    %v358 = vunpack.c.l.b16 %v323
    %v359 = vunpack.c.h.b16 %v323
    %v360 = vunpack.c.l.b16 %v324
    %v361 = vunpack.c.h.b16 %v324
    %v362 = vpack.c.b16 %v348, %v346
    %v363 = vpack.c.b16 %v349, %v347
    %v364 = vpack.c.b16 %v352, %v350
    %v365 = vpack.c.b16 %v353, %v351
    %v366 = vpack.c.b16 %v356, %v354
    %v367 = vpack.c.b16 %v357, %v355
    %v368 = vpack.c.b16 %v360, %v358
    %v369 = vpack.c.b16 %v361, %v359
    %v379 = vsel %vm252, %v315, 0
    %381 = vmatprep.subr.bf16.mxu0 %v363
    %382 = vmatpush1.bf16.msra.mxu0 %v362
    %383 = vmatprep.subr.bf16.mxu0 %v365
    %384 = vmatpush1.bf16.msra.mxu0 %v364
    %385 = vmatprep.subr.bf16.mxu0 %v367
    %386 = vmatpush1.bf16.msra.mxu0 %v366
    %387 = vmatprep.subr.bf16.mxu0 %v369
    %388 = vmatpush1.bf16.msra.mxu0 %v368
    %389 = vmatprep.subr.bf16.mxu0 0
    %390 = vmatpush1.bf16.msra.mxu0 0
    %391 = vmatprep.subr.bf16.mxu0 0
    %392 = vmatpush1.bf16.msra.mxu0 0
    %393 = vmatprep.subr.bf16.mxu0 0
    %394 = vmatpush1.bf16.msra.mxu0 0
    %395 = vmatprep.subr.bf16.mxu0 0
    %396 = vmatpush1.bf16.msra.mxu0 0
    %397 = vmatprep.subr.bf16.mxu0 0
    %398 = vmatpush1.bf16.msra.mxu0 0
    %399 = vmatprep.subr.bf16.mxu0 0
    %400 = vmatpush1.bf16.msra.mxu0 0
    %401 = vmatprep.subr.bf16.mxu0 0
    %402 = vmatpush1.bf16.msra.mxu0 0
    %403 = vmatprep.subr.bf16.mxu0 0
    %404 = vmatpush1.bf16.msra.mxu0 0
    %405 = vmatprep.subr.bf16.mxu0 0
    %406 = vmatpush1.bf16.msra.mxu0 0
    %407 = vmatprep.subr.bf16.mxu0 0
    %408 = vmatpush1.bf16.msra.mxu0 0
    %409 = vmatprep.subr.bf16.mxu0 0
    %410 = vmatpush1.bf16.msra.mxu0 0
    %411 = vmatprep.subr.bf16.mxu0 0
    %412 = vmatpush1.bf16.msra.mxu0 0
    %413 = vmatprep.mubr.bf16.mxu0 0
    %414 = vmatmul.mubr.bf16.gmra.mrb[0].mxu0 %v379
    %v415 = vpop.f32.mrb[0].mxu0
    %v416 = vadd.f32 %v331, %v415
    %v417 = vpop.f32.mrb[0].mxu0
    %v418 = vadd.f32 %v335, %v417
    %v419 = vpop.f32.mrb[0].mxu0
    %v420 = vpop.f32.mrb[0].mxu0
    %421 = vdwg.mxu0
    %v422 = vmax.f32 %v416, 0.0
    %v423 = vmax.f32 %v418, 0.0
    %425 = vrot.lane.b32.xlu0 %v422, 64
    %v426 = vpop.permute.xlu0 %425
    %v428 = vadd.f32 %v422, %v426
    %v429 = vadd.f32 %v428, %v423
    %v430 = vpack.c.bf16 %v429, %v429
    %s431 = scalar_lea.vmem %s3, 128
    %v432 = vld [vmem:[%s431] sm:$0xff]
    %v433 = vld [vmem:[%s431 + $0x8] sm:$0xff]
    %v434 = vld [vmem:[%s431 + $0x10] sm:$0xff]
    %v435 = vld [vmem:[%s431 + $0x18] sm:$0xff]
    %v436 = vld [vmem:[%s431 + $0x20] sm:$0xff]
    %v437 = vld [vmem:[%s431 + $0x28] sm:$0xff]
    %v438 = vld [vmem:[%s431 + $0x30] sm:$0xff]
    %v439 = vld [vmem:[%s431 + $0x38] sm:$0xff]
    %s440 = scalar_lea.vmem %s4, 4
    %v441 = vld [vmem:[%s440] sm:$0x3]
    %v443 = vlaneseq
    %v444 = vshrl.u32 %v443, 7
    %v445 = vsub.s32 0, %v444
    %v446 = vrot.slane %v441, %v445
    %v447 = vlaneseq
    %v448 = vshrl.u32 %v447, 7
    %v449 = vsub.s32 1, %v448
    %v450 = vrot.slane %v441, %v449
    %v461 = vunpack.c.l.b16 %v432
    %v462 = vunpack.c.h.b16 %v432
    %v463 = vunpack.c.l.b16 %v433
    %v464 = vunpack.c.h.b16 %v433
    %v465 = vunpack.c.l.b16 %v434
    %v466 = vunpack.c.h.b16 %v434
    %v467 = vunpack.c.l.b16 %v435
    %v468 = vunpack.c.h.b16 %v435
    %v469 = vunpack.c.l.b16 %v436
    %v470 = vunpack.c.h.b16 %v436
    %v471 = vunpack.c.l.b16 %v437
    %v472 = vunpack.c.h.b16 %v437
    %v473 = vunpack.c.l.b16 %v438
    %v474 = vunpack.c.h.b16 %v438
    %v475 = vunpack.c.l.b16 %v439
    %v476 = vunpack.c.h.b16 %v439
    %v477 = vpack.c.b16 %v463, %v461
    %v478 = vpack.c.b16 %v464, %v462
    %v479 = vpack.c.b16 %v467, %v465
    %v480 = vpack.c.b16 %v468, %v466
    %v481 = vpack.c.b16 %v471, %v469
    %v482 = vpack.c.b16 %v472, %v470
    %v483 = vpack.c.b16 %v475, %v473
    %v484 = vpack.c.b16 %v476, %v474
    %v494 = vsel %vm252, %v430, 0
    %496 = vmatprep.subr.bf16.mxu0 %v478
    %497 = vmatpush1.bf16.msra.mxu0 %v477
    %498 = vmatprep.subr.bf16.mxu0 %v480
    %499 = vmatpush1.bf16.msra.mxu0 %v479
    %500 = vmatprep.subr.bf16.mxu0 %v482
    %501 = vmatpush1.bf16.msra.mxu0 %v481
    %502 = vmatprep.subr.bf16.mxu0 %v484
    %503 = vmatpush1.bf16.msra.mxu0 %v483
    %504 = vmatprep.subr.bf16.mxu0 0
    %505 = vmatpush1.bf16.msra.mxu0 0
    %506 = vmatprep.subr.bf16.mxu0 0
    %507 = vmatpush1.bf16.msra.mxu0 0
    %508 = vmatprep.subr.bf16.mxu0 0
    %509 = vmatpush1.bf16.msra.mxu0 0
    %510 = vmatprep.subr.bf16.mxu0 0
    %511 = vmatpush1.bf16.msra.mxu0 0
    %512 = vmatprep.subr.bf16.mxu0 0
    %513 = vmatpush1.bf16.msra.mxu0 0
    %514 = vmatprep.subr.bf16.mxu0 0
    %515 = vmatpush1.bf16.msra.mxu0 0
    %516 = vmatprep.subr.bf16.mxu0 0
    %517 = vmatpush1.bf16.msra.mxu0 0
    %518 = vmatprep.subr.bf16.mxu0 0
    %519 = vmatpush1.bf16.msra.mxu0 0
    %520 = vmatprep.subr.bf16.mxu0 0
    %521 = vmatpush1.bf16.msra.mxu0 0
    %522 = vmatprep.subr.bf16.mxu0 0
    %523 = vmatpush1.bf16.msra.mxu0 0
    %524 = vmatprep.subr.bf16.mxu0 0
    %525 = vmatpush1.bf16.msra.mxu0 0
    %526 = vmatprep.subr.bf16.mxu0 0
    %527 = vmatpush1.bf16.msra.mxu0 0
    %528 = vmatprep.mubr.bf16.mxu0 0
    %529 = vmatmul.mubr.bf16.gmra.mrb[0].mxu0 %v494
    %v530 = vpop.f32.mrb[0].mxu0
    %v531 = vadd.f32 %v446, %v530
    %v532 = vpop.f32.mrb[0].mxu0
    %v533 = vadd.f32 %v450, %v532
    %v534 = vpop.f32.mrb[0].mxu0
    %v535 = vpop.f32.mrb[0].mxu0
    %536 = vdwg.mxu0
    %v537 = vmax.f32 %v531, 0.0
    %v538 = vmax.f32 %v533, 0.0
    %540 = vrot.lane.b32.xlu0 %v537, 64
    %v541 = vpop.permute.xlu0 %540
    %v543 = vadd.f32 %v537, %v541
    %v544 = vadd.f32 %v543, %v538
    %546 = vrot.lane.b32.xlu0 %v544, 96
    %v547 = vpop.permute.xlu0 %546
    %v549 = vadd.f32 %v544, %v547
    %551 = vrot.lane.b32.xlu0 %v549, 64
    %v552 = vpop.permute.xlu0 %551
    %v554 = vsel %vm252, %v429, %v552
    %v555 = vpack.c.bf16 %v554, %v554
    %v556 = vld [vmem:[%s5] sm:$0xf]
    %v557 = vld [vmem:[%s5 + $0x4] sm:$0xf]
    %v558 = vld [vmem:[%s5 + $0x8] sm:$0xf]
    %v559 = vld [vmem:[%s5 + $0xc] sm:$0xf]
    %v560 = vld [vmem:[%s5 + $0x10] sm:$0xf]
    %v561 = vld [vmem:[%s5 + $0x14] sm:$0xf]
    %v562 = vld [vmem:[%s5 + $0x18] sm:$0xf]
    %v563 = vld [vmem:[%s5 + $0x1c] sm:$0xf]
    %v564 = vld [vmem:[%s5 + $0x20] sm:$0xf]
    %v565 = vld [vmem:[%s5 + $0x24] sm:$0xf]
    %v566 = vld [vmem:[%s5 + $0x28] sm:$0xf]
    %v567 = vld [vmem:[%s5 + $0x2c] sm:$0xf]
    %v568 = vld [vmem:[%s6] sm:$0x1]
    %v570 = vlaneseq
    %v571 = vshrl.u32 %v570, 7
    %v572 = vsub.s32 0, %v571
    %v573 = vrot.slane %v568, %v572
    %v587 = vunpack.c.l.b16 %v556
    %v588 = vunpack.c.l.b16 %v557
    %v589 = vunpack.c.l.b16 %v558
    %v590 = vunpack.c.l.b16 %v559
    %v591 = vunpack.c.l.b16 %v560
    %v592 = vunpack.c.l.b16 %v561
    %v593 = vunpack.c.l.b16 %v562
    %v594 = vunpack.c.l.b16 %v563
    %v595 = vunpack.c.l.b16 %v564
    %v596 = vunpack.c.l.b16 %v565
    %v597 = vunpack.c.l.b16 %v566
    %v598 = vunpack.c.l.b16 %v567
    %v599 = vpack.c.b16 %v588, %v587
    %v600 = vpack.c.b16 %v590, %v589
    %v601 = vpack.c.b16 %v592, %v591
    %v602 = vpack.c.b16 %v594, %v593
    %v603 = vpack.c.b16 %v596, %v595
    %v604 = vpack.c.b16 %v598, %v597
    %vm611 = vcmask 785408
    %v613 = vsel %vm611, %v555, 0
    %615 = vmatprep.subr.bf16.mxu0 0
    %616 = vmatpush1.bf16.msra.mxu0 %v599
    %617 = vmatprep.subr.bf16.mxu0 0
    %618 = vmatpush1.bf16.msra.mxu0 %v600
    %619 = vmatprep.subr.bf16.mxu0 0
    %620 = vmatpush1.bf16.msra.mxu0 %v601
    %621 = vmatprep.subr.bf16.mxu0 0
    %622 = vmatpush1.bf16.msra.mxu0 %v602
    %623 = vmatprep.subr.bf16.mxu0 0
    %624 = vmatpush1.bf16.msra.mxu0 %v603
    %625 = vmatprep.subr.bf16.mxu0 0
    %626 = vmatpush1.bf16.msra.mxu0 %v604
    %627 = vmatprep.subr.bf16.mxu0 0
    %628 = vmatpush1.bf16.msra.mxu0 0
    %629 = vmatprep.subr.bf16.mxu0 0
    %630 = vmatpush1.bf16.msra.mxu0 0
    %631 = vmatprep.subr.bf16.mxu0 0
    %632 = vmatpush1.bf16.msra.mxu0 0
    %633 = vmatprep.subr.bf16.mxu0 0
    %634 = vmatpush1.bf16.msra.mxu0 0
    %635 = vmatprep.subr.bf16.mxu0 0
    %636 = vmatpush1.bf16.msra.mxu0 0
    %637 = vmatprep.subr.bf16.mxu0 0
    %638 = vmatpush1.bf16.msra.mxu0 0
    %639 = vmatprep.subr.bf16.mxu0 0
    %640 = vmatpush1.bf16.msra.mxu0 0
    %641 = vmatprep.subr.bf16.mxu0 0
    %642 = vmatpush1.bf16.msra.mxu0 0
    %643 = vmatprep.subr.bf16.mxu0 0
    %644 = vmatpush1.bf16.msra.mxu0 0
    %645 = vmatprep.subr.bf16.mxu0 0
    %646 = vmatpush1.bf16.msra.mxu0 0
    %647 = vmatprep.mubr.bf16.mxu0 0
    %648 = vmatmul.mubr.bf16.gmra.mrb[0].mxu0 %v613
    %v649 = vpop.f32.mrb[0].mxu0
    %v650 = vadd.f32 %v573, %v649
    %v651 = vpop.f32.mrb[0].mxu0
    %v652 = vpop.f32.mrb[0].mxu0
    %v653 = vpop.f32.mrb[0].mxu0
    %654 = vdwg.mxu0
    %v655 = vmax.f32 %v650, 0.0
    %656 = vst.msk [vmem:[#allocation2] sm:$0xff] %vm53, %v655
    // Predicated region
    $region30: #{cell_forward_pallas.1} parent=1 // pred_check
      _
    $region31: #{cell_forward_pallas.1} parent=1 // pred_check_branch
      %658 = sbr.rel (0) target = $region33
    $region32: #{cell_forward_pallas.1} parent=1 // pred_region
      %s660 = ssub.s32 128, 128
      %661 = vsyncadd [#allocation3], %s660
      %s663 = sshll.u32 [#allocation2], 4
      %s664 = int_to_ptr.vmem [resolvable:$true] %s663
      %666 = dma.vmem_to_hbm [thread:$0]  %s664, 128, %s7, [#allocation3]
    $region33: #{cell_forward_pallas.1} parent=1 // pred_fallthru
      _
    // Predicated region
    $region34: #{cell_forward_pallas.1} parent=1 // pred_check
      _
    $region35: #{cell_forward_pallas.1} parent=1 // pred_check_branch
      %668 = sbr.rel (0) target = $region37
    $region36: #{cell_forward_pallas.1} parent=1 // pred_region
      %669 = dma.done [#allocation3], 128
    $region37: #{cell_forward_pallas.1} parent=1 // pred_fallthru
      _
    %670 = vsyncpa [#allocation3], 1

</llo_original>
